<compile_context>
chip_gen: v7x
topology: tpu7x:2x2x1
jax: 0.10.0
libtpu: 0.0.40
codegen_flags: <defaults>
</compile_context>

<pallas_src>
import functools
import math

import jax
import jax.numpy as jnp
from jax import lax
from jax.experimental import pallas as pl
from jax.experimental.pallas import tpu as pltpu


def _mab_fused_kernel(q_ref, k_ref, bias_ref, wq_ref, bq_ref, wkv_ref, bkv_ref,
                      wo_ref, bo_ref, out_ref, h_scratch,
                      *, num_heads, ds, bt, nq, nk, use_bf16):
    dim_V = num_heads * ds

    def mx(x):
        # Feed the MXU in bf16 when requested; accumulation stays f32.
        return x.astype(jnp.bfloat16) if use_bf16 else x

    # Flatten (Bt, Nq, dim) -> (Bt*Nq, dim): free reshape (Nq is sublane-aligned),
    # lets one matmul serve all Bt batches.
    q = q_ref[...].reshape(bt * nq, q_ref.shape[-1])          # (Bt*Nq, dim_Q)
    k = k_ref[...].reshape(bt * nk, k_ref.shape[-1])          # (Bt*Nk, dim_K)

    # Fused projections (all heads, all Bt batches at once), f32 accumulation.
    qh = jnp.dot(q, wq_ref[...], preferred_element_type=jnp.float32) + bq_ref[...]   # (Bt*Nq, dim_V)
    kv = jnp.dot(k, wkv_ref[...], preferred_element_type=jnp.float32) + bkv_ref[...]  # (Bt*Nk, 2*dim_V)

    bias = bias_ref[...]                                      # (Bt, Nq, Nk) additive mask bias, f32

    # Per-head masked attention (static loop; H=4 — fine per perf review).
    for h in range(num_heads):
        lo = h * ds
        qh_h = qh[:, lo:lo + ds].reshape(bt, nq, ds)          # (Bt, Nq, ds)
        kh_h = kv[:, lo:lo + ds].reshape(bt, nk, ds)          # (Bt, Nk, ds)  (pre-scaled by 1/sqrt(ds))
        vh_h = kv[:, dim_V + lo:dim_V + lo + ds].reshape(bt, nk, ds)

        dots = lax.dot_general(mx(qh_h), mx(kh_h),
                               dimension_numbers=(((2,), (2,)), ((0,), (0,))),
                               preferred_element_type=jnp.float32)  # (Bt, Nq, Nk)
        dots = dots + bias
        dots = dots - jnp.max(dots, axis=-1, keepdims=True)
        e = jnp.exp(dots)
        denom = jnp.sum(e, axis=-1, keepdims=True)            # (Bt, Nq, 1)

        av = lax.dot_general(mx(e), mx(vh_h),
                             dimension_numbers=(((2,), (1,)), ((0,), (0,))),
                             preferred_element_type=jnp.float32)    # (Bt, Nq, ds)

        # Residual Q_ + softmax(dots) @ V_ ; exact division (no approx recip).
        head_out = qh_h + av / denom
        # Write the head's slice straight into the concat-layout scratch.
        h_scratch[:, lo:lo + ds] = head_out.reshape(bt * nq, ds)

    # H + relu(fc_o(H))
    Hm = h_scratch[...]                                        # (Bt*Nq, dim_V)
    o = jnp.dot(mx(Hm), wo_ref[...], preferred_element_type=jnp.float32) + bo_ref[...]
    out_ref[...] = (Hm + jnp.maximum(o, 0.0)).reshape(bt, nq, dim_V)


def _pick_block_batch(B, Nq, Nk, dim_Q, dim_K, dim_V,
                      vmem_budget_bytes=8 * 1024 * 1024):
    """Largest Bt dividing B such that (a) the parallel grid length stays >= 2
    when B >= 2 (keeps both v7x TensorCores busy) and (b) the double-buffered
    per-step blocks + scratch stay well inside a v7x-safe VMEM budget."""
    per_batch = 4 * (2 * (Nq * dim_Q + Nk * dim_K + Nq * Nk) + 3 * Nq * dim_V)
    best = 1
    for bt in range(1, B + 1):
        if B % bt != 0:
            continue
        grid_len = B // bt
        if B >= 2 and grid_len < 2:
            continue
        if bt * per_batch > vmem_budget_bytes:
            continue
        best = bt
    return best


def mab_forward(Q, K, mask_a, mask_b, params, num_heads, *, use_bf16=False):
    B, Nq, dim_Q = Q.shape
    _, Nk, dim_K = K.shape
    dim_V = params["wq"].shape[1]
    ds = dim_V // num_heads
    scale = 1.0 / math.sqrt(ds)

    # Fold the 1/sqrt(ds) attention scale into the K projection (kh is only used
    # in the dots product, so this is exactly equivalent), and fuse wk|wv.
    wkv = jnp.concatenate([params["wk"] * scale, params["wv"]], axis=1)      # (dim_K, 2*dim_V)
    bkv = jnp.concatenate([params["bk"] * scale, params["bv"]], axis=0)      # (2*dim_V,)

    # Head-invariant additive mask bias, computed once in XLA outside the kernel.
    neg = -jnp.finfo(jnp.float32).max
    mprod = jnp.einsum("bqm,bkm->bqk",
                       mask_a.astype(jnp.float32), mask_b.astype(jnp.float32))
    bias = jnp.where(mprod == 1.0, 0.0, neg).astype(jnp.float32)             # (B, Nq, Nk)

    mxu_dtype = jnp.bfloat16 if use_bf16 else jnp.float32
    cast = lambda x: x.astype(mxu_dtype)

    Bt = _pick_block_batch(B, Nq, Nk, dim_Q, dim_K, dim_V)
    grid = (B // Bt,)

    kernel = functools.partial(_mab_fused_kernel, num_heads=num_heads, ds=ds,
                               bt=Bt, nq=Nq, nk=Nk, use_bf16=use_bf16)

    out = pl.pallas_call(
        kernel,
        out_shape=jax.ShapeDtypeStruct((B, Nq, dim_V), jnp.float32),
        grid=grid,
        in_specs=[
            pl.BlockSpec((Bt, Nq, dim_Q),     lambda b: (b, 0, 0)),   # Q
            pl.BlockSpec((Bt, Nk, dim_K),     lambda b: (b, 0, 0)),   # K
            pl.BlockSpec((Bt, Nq, Nk),        lambda b: (b, 0, 0)),   # additive mask bias
            pl.BlockSpec((dim_Q, dim_V),      lambda b: (0, 0)),      # wq
            pl.BlockSpec((1, dim_V),          lambda b: (0, 0)),      # bq
            pl.BlockSpec((dim_K, 2 * dim_V),  lambda b: (0, 0)),      # wk|wv (wk pre-scaled)
            pl.BlockSpec((1, 2 * dim_V),      lambda b: (0, 0)),      # bk|bv (bk pre-scaled)
            pl.BlockSpec((dim_V, dim_V),      lambda b: (0, 0)),      # wo
            pl.BlockSpec((1, dim_V),          lambda b: (0, 0)),      # bo
        ],
        out_specs=pl.BlockSpec((Bt, Nq, dim_V), lambda b: (b, 0, 0)),
        scratch_shapes=[pltpu.VMEM((Bt * Nq, dim_V), jnp.float32)],
        compiler_params=pltpu.CompilerParams(
            dimension_semantics=("parallel",)),
    )(cast(Q), cast(K), bias,
      cast(params["wq"]), params["bq"].reshape(1, dim_V).astype(jnp.float32),
      cast(wkv), bkv.reshape(1, 2 * dim_V).astype(jnp.float32),
      cast(params["wo"]), params["bo"].reshape(1, dim_V).astype(jnp.float32))
    return out


def mab_reference(Q, K, mask_a, mask_b, params, num_heads):
    """Pure-JAX transcription of the PyTorch forward (ln=False), for checking."""
    dim_V = params["wq"].shape[1]
    ds = dim_V // num_heads
    Qp = Q @ params["wq"] + params["bq"]
    Kp = K @ params["wk"] + params["bk"]
    Vp = K @ params["wv"] + params["bv"]
    split = lambda x: jnp.concatenate(jnp.split(x, num_heads, axis=2), axis=0)
    Q_, K_, V_ = split(Qp), split(Kp), split(Vp)
    ma = jnp.tile(mask_a, (num_heads, 1, 1))
    mb = jnp.tile(mask_b, (num_heads, 1, 1))
    dots = jnp.einsum("bqd,bkd->bqk", Q_, K_) / math.sqrt(ds)
    mask = jnp.einsum("bqm,bkm->bqk", ma, mb) == 1.0
    dots = jnp.where(mask, dots, -jnp.finfo(dots.dtype).max)
    A = jax.nn.softmax(dots, axis=2)
    Hh = Q_ + jnp.einsum("bqk,bkd->bqd", A, V_)
    H = jnp.concatenate(jnp.split(Hh, num_heads, axis=0), axis=2)
    return H + jax.nn.relu(H @ params["wo"] + params["bo"])


if __name__ == "__main__":
    B, Nq, Nk, M = 2, 8, 8, 2
    dim_Q, dim_K, dim_V, num_heads = 16, 16, 32, 4

    key = jax.random.PRNGKey(0)
    keys = jax.random.split(key, 12)

    Q = jax.random.normal(keys[0], (B, Nq, dim_Q), jnp.float32)
    K = jax.random.normal(keys[1], (B, Nk, dim_K), jnp.float32)
    # binary (float) masks, as the module's bmm(mask_a, mask_b^T)==1.0 implies
    mask_a = (jax.random.uniform(keys[2], (B, Nq, M)) > 0.3).astype(jnp.float32)
    mask_b = (jax.random.uniform(keys[3], (B, Nk, M)) > 0.3).astype(jnp.float32)

    def linear_init(kw, kb, fan_in, fan_out):
        bound = 1.0 / math.sqrt(fan_in)
        w = jax.random.uniform(kw, (fan_in, fan_out), jnp.float32, -bound, bound)
        b = jax.random.uniform(kb, (fan_out,), jnp.float32, -bound, bound)
        return w, b

    wq, bq = linear_init(keys[4], keys[5], dim_Q, dim_V)
    wk, bk = linear_init(keys[6], keys[7], dim_K, dim_V)
    wv, bv = linear_init(keys[8], keys[9], dim_K, dim_V)
    wo, bo = linear_init(keys[10], keys[11], dim_V, dim_V)
    params = dict(wq=wq, bq=bq, wk=wk, bk=bk, wv=wv, bv=bv, wo=wo, bo=bo)

    ref = mab_reference(Q, K, mask_a, mask_b, params, num_heads)

    # Default f32 path: exact softmax division -> tight tolerance.
    out = mab_forward(Q, K, mask_a, mask_b, params, num_heads)
    out = jax.block_until_ready(out)
    assert out.shape == (B, Nq, dim_V), out.shape
    assert jnp.allclose(out, ref, atol=1e-4, rtol=1e-4), (
        float(jnp.max(jnp.abs(out - ref))))

    # bf16-MXU path (perf-review optimization for v6e/v7x production shapes):
    # same semantics, relaxed tolerance for the bf16 operand rounding.
    out_bf16 = jax.block_until_ready(
        mab_forward(Q, K, mask_a, mask_b, params, num_heads, use_bf16=True))
    assert out_bf16.shape == (B, Nq, dim_V), out_bf16.shape
    assert jnp.allclose(out_bf16, ref, atol=1e-1, rtol=1e-1), (
        float(jnp.max(jnp.abs(out_bf16 - ref))))

    print("KERNEL_OK")
</pallas_src>

<mosaic_0001>
module attributes {stable_mosaic.version = 11 : i64} {
  func.func @_mab_fused_kernel(%arg0: i32, %arg1: memref<1x8x16xf32, #tpu.memory_space<vmem>>, %arg2: memref<1x8x16xf32, #tpu.memory_space<vmem>>, %arg3: memref<1x8x8xf32, #tpu.memory_space<vmem>>, %arg4: memref<16x32xf32, #tpu.memory_space<vmem>>, %arg5: memref<1x32xf32, #tpu.memory_space<vmem>>, %arg6: memref<16x64xf32, #tpu.memory_space<vmem>>, %arg7: memref<1x64xf32, #tpu.memory_space<vmem>>, %arg8: memref<32x32xf32, #tpu.memory_space<vmem>>, %arg9: memref<1x32xf32, #tpu.memory_space<vmem>>, %arg10: memref<1x8x32xf32, #tpu.memory_space<vmem>>, %arg11: memref<8x32xf32, #tpu.memory_space<vmem>>) attributes {dimension_semantics = [#tpu.dimension_semantics<parallel>], iteration_bounds = array<i64: 2>, scalar_prefetch = 0 : i64, scratch_operands = 1 : i64, tpu.core_type = #tpu.core_type<tc>, window_params = [{transform_indices = @transform_0, window_bounds = array<i64: 1, 8, 16>}, {transform_indices = @transform_1, window_bounds = array<i64: 1, 8, 16>}, {transform_indices = @transform_2, window_bounds = array<i64: 1, 8, 8>}, {pipeline_mode = #tpu.pipeline_mode<synchronous>, transform_indices = @transform_3, window_bounds = array<i64: 16, 32>}, {pipeline_mode = #tpu.pipeline_mode<synchronous>, transform_indices = @transform_4, window_bounds = array<i64: 1, 32>}, {pipeline_mode = #tpu.pipeline_mode<synchronous>, transform_indices = @transform_5, window_bounds = array<i64: 16, 64>}, {pipeline_mode = #tpu.pipeline_mode<synchronous>, transform_indices = @transform_6, window_bounds = array<i64: 1, 64>}, {pipeline_mode = #tpu.pipeline_mode<synchronous>, transform_indices = @transform_7, window_bounds = array<i64: 32, 32>}, {pipeline_mode = #tpu.pipeline_mode<synchronous>, transform_indices = @transform_8, window_bounds = array<i64: 1, 32>}, {transform_indices = @transform_9, window_bounds = array<i64: 1, 8, 32>}]} {
    %c0 = arith.constant 0 : index
    %c0_0 = arith.constant 0 : index
    %c0_1 = arith.constant 0 : index
    %0 = vector.load %arg1[%c0, %c0_0, %c0_1] : memref<1x8x16xf32, #tpu.memory_space<vmem>>, vector<1x8x16xf32>
    %1 = vector.shape_cast %0 : vector<1x8x16xf32> to vector<8x16xf32>
    %c0_2 = arith.constant 0 : index
    %c0_3 = arith.constant 0 : index
    %c0_4 = arith.constant 0 : index
    %2 = vector.load %arg2[%c0_2, %c0_3, %c0_4] : memref<1x8x16xf32, #tpu.memory_space<vmem>>, vector<1x8x16xf32>
    %3 = vector.shape_cast %2 : vector<1x8x16xf32> to vector<8x16xf32>
    %c0_5 = arith.constant 0 : index
    %c0_6 = arith.constant 0 : index
    %4 = vector.load %arg4[%c0_5, %c0_6] : memref<16x32xf32, #tpu.memory_space<vmem>>, vector<16x32xf32>
    %cst = arith.constant dense<0.000000e+00> : vector<8x32xf32>
    %5 = tpu.matmul %1, %4, %cst {dimension_numbers = #tpu.dot_dimension_numbers<[1], [0], [0], [1], [0, 0, 1, 1], [], []>} : vector<8x16xf32>, vector<16x32xf32>, vector<8x32xf32> -> vector<8x32xf32>
    %c0_7 = arith.constant 0 : index
    %c0_8 = arith.constant 0 : index
    %6 = vector.load %arg5[%c0_7, %c0_8] : memref<1x32xf32, #tpu.memory_space<vmem>>, vector<1x32xf32>
    %7 = vector.broadcast %6 : vector<1x32xf32> to vector<8x32xf32>
    %8 = arith.addf %5, %7 : vector<8x32xf32>
    %c0_9 = arith.constant 0 : index
    %c0_10 = arith.constant 0 : index
    %9 = vector.load %arg6[%c0_9, %c0_10] : memref<16x64xf32, #tpu.memory_space<vmem>>, vector<16x64xf32>
    %cst_11 = arith.constant dense<0.000000e+00> : vector<8x64xf32>
    %10 = tpu.matmul %3, %9, %cst_11 {dimension_numbers = #tpu.dot_dimension_numbers<[1], [0], [0], [1], [0, 0, 1, 1], [], []>} : vector<8x16xf32>, vector<16x64xf32>, vector<8x64xf32> -> vector<8x64xf32>
    %c0_12 = arith.constant 0 : index
    %c0_13 = arith.constant 0 : index
    %11 = vector.load %arg7[%c0_12, %c0_13] : memref<1x64xf32, #tpu.memory_space<vmem>>, vector<1x64xf32>
    %12 = vector.broadcast %11 : vector<1x64xf32> to vector<8x64xf32>
    %13 = arith.addf %10, %12 : vector<8x64xf32>
    %c0_14 = arith.constant 0 : index
    %c0_15 = arith.constant 0 : index
    %c0_16 = arith.constant 0 : index
    %14 = vector.load %arg3[%c0_14, %c0_15, %c0_16] : memref<1x8x8xf32, #tpu.memory_space<vmem>>, vector<1x8x8xf32>
    %15 = vector.extract_strided_slice %8 {offsets = [0, 0], sizes = [8, 8], strides = [1, 1]} : vector<8x32xf32> to vector<8x8xf32>
    %16 = vector.shape_cast %15 : vector<8x8xf32> to vector<1x8x8xf32>
    %17 = vector.extract_strided_slice %13 {offsets = [0, 0], sizes = [8, 8], strides = [1, 1]} : vector<8x64xf32> to vector<8x8xf32>
    %18 = vector.shape_cast %17 : vector<8x8xf32> to vector<1x8x8xf32>
    %19 = vector.extract_strided_slice %13 {offsets = [0, 32], sizes = [8, 8], strides = [1, 1]} : vector<8x64xf32> to vector<8x8xf32>
    %20 = vector.shape_cast %19 : vector<8x8xf32> to vector<1x8x8xf32>
    %cst_17 = arith.constant dense<0.000000e+00> : vector<1x8x8xf32>
    %21 = tpu.matmul %16, %18, %cst_17 {dimension_numbers = #tpu.dot_dimension_numbers<[2], [2], [1], [1], [0, 0, 0, 1, 1, 1], [0], [0]>} : vector<1x8x8xf32>, vector<1x8x8xf32>, vector<1x8x8xf32> -> vector<1x8x8xf32>
    %22 = arith.addf %21, %14 : vector<1x8x8xf32>
    %cst_18 = arith.constant dense<0xFF800000> : vector<1x8xf32>
    %23 = vector.multi_reduction <maximumf>, %22, %cst_18 [2] : vector<1x8x8xf32> to vector<1x8xf32>
    %24 = vector.shape_cast %23 : vector<1x8xf32> to vector<1x8x1xf32>
    %25 = vector.broadcast %24 : vector<1x8x1xf32> to vector<1x8x8xf32>
    %26 = arith.subf %22, %25 : vector<1x8x8xf32>
    %27 = math.exp %26 : vector<1x8x8xf32>
    %cst_19 = arith.constant dense<0.000000e+00> : vector<1x8xf32>
    %28 = vector.multi_reduction <add>, %27, %cst_19 [2] : vector<1x8x8xf32> to vector<1x8xf32>
    %29 = vector.shape_cast %28 : vector<1x8xf32> to vector<1x8x1xf32>
    %cst_20 = arith.constant dense<0.000000e+00> : vector<1x8x8xf32>
    %30 = tpu.matmul %27, %20, %cst_20 {dimension_numbers = #tpu.dot_dimension_numbers<[2], [1], [1], [2], [0, 0, 0, 1, 1, 2], [0], [0]>} : vector<1x8x8xf32>, vector<1x8x8xf32>, vector<1x8x8xf32> -> vector<1x8x8xf32>
    %31 = vector.broadcast %29 : vector<1x8x1xf32> to vector<1x8x8xf32>
    %32 = arith.divf %30, %31 : vector<1x8x8xf32>
    %33 = arith.addf %16, %32 : vector<1x8x8xf32>
    %34 = vector.shape_cast %33 : vector<1x8x8xf32> to vector<8x8xf32>
    %c0_21 = arith.constant 0 : index
    %c0_22 = arith.constant 0 : index
    %35 = vector.load %arg11[%c0_21, %c0_22] : memref<8x32xf32, #tpu.memory_space<vmem>>, vector<8x8xf32>
    tpu.vector_store %arg11[%c0_21, %c0_22], %34 {strides = array<i32>} : memref<8x32xf32, #tpu.memory_space<vmem>>, vector<8x8xf32>,
    %36 = vector.extract_strided_slice %8 {offsets = [0, 8], sizes = [8, 8], strides = [1, 1]} : vector<8x32xf32> to vector<8x8xf32>
    %37 = vector.shape_cast %36 : vector<8x8xf32> to vector<1x8x8xf32>
    %38 = vector.extract_strided_slice %13 {offsets = [0, 8], sizes = [8, 8], strides = [1, 1]} : vector<8x64xf32> to vector<8x8xf32>
    %39 = vector.shape_cast %38 : vector<8x8xf32> to vector<1x8x8xf32>
    %40 = vector.extract_strided_slice %13 {offsets = [0, 40], sizes = [8, 8], strides = [1, 1]} : vector<8x64xf32> to vector<8x8xf32>
    %41 = vector.shape_cast %40 : vector<8x8xf32> to vector<1x8x8xf32>
    %cst_23 = arith.constant dense<0.000000e+00> : vector<1x8x8xf32>
    %42 = tpu.matmul %37, %39, %cst_23 {dimension_numbers = #tpu.dot_dimension_numbers<[2], [2], [1], [1], [0, 0, 0, 1, 1, 1], [0], [0]>} : vector<1x8x8xf32>, vector<1x8x8xf32>, vector<1x8x8xf32> -> vector<1x8x8xf32>
    %43 = arith.addf %42, %14 : vector<1x8x8xf32>
    %cst_24 = arith.constant dense<0xFF800000> : vector<1x8xf32>
    %44 = vector.multi_reduction <maximumf>, %43, %cst_24 [2] : vector<1x8x8xf32> to vector<1x8xf32>
    %45 = vector.shape_cast %44 : vector<1x8xf32> to vector<1x8x1xf32>
    %46 = vector.broadcast %45 : vector<1x8x1xf32> to vector<1x8x8xf32>
    %47 = arith.subf %43, %46 : vector<1x8x8xf32>
    %48 = math.exp %47 : vector<1x8x8xf32>
    %cst_25 = arith.constant dense<0.000000e+00> : vector<1x8xf32>
    %49 = vector.multi_reduction <add>, %48, %cst_25 [2] : vector<1x8x8xf32> to vector<1x8xf32>
    %50 = vector.shape_cast %49 : vector<1x8xf32> to vector<1x8x1xf32>
    %cst_26 = arith.constant dense<0.000000e+00> : vector<1x8x8xf32>
    %51 = tpu.matmul %48, %41, %cst_26 {dimension_numbers = #tpu.dot_dimension_numbers<[2], [1], [1], [2], [0, 0, 0, 1, 1, 2], [0], [0]>} : vector<1x8x8xf32>, vector<1x8x8xf32>, vector<1x8x8xf32> -> vector<1x8x8xf32>
    %52 = vector.broadcast %50 : vector<1x8x1xf32> to vector<1x8x8xf32>
    %53 = arith.divf %51, %52 : vector<1x8x8xf32>
    %54 = arith.addf %37, %53 : vector<1x8x8xf32>
    %55 = vector.shape_cast %54 : vector<1x8x8xf32> to vector<8x8xf32>
    %c0_27 = arith.constant 0 : index
    %c8 = arith.constant 8 : index
    %56 = vector.load %arg11[%c0_27, %c8] : memref<8x32xf32, #tpu.memory_space<vmem>>, vector<8x8xf32>
    tpu.vector_store %arg11[%c0_27, %c8], %55 {strides = array<i32>} : memref<8x32xf32, #tpu.memory_space<vmem>>, vector<8x8xf32>,
    %57 = vector.extract_strided_slice %8 {offsets = [0, 16], sizes = [8, 8], strides = [1, 1]} : vector<8x32xf32> to vector<8x8xf32>
    %58 = vector.shape_cast %57 : vector<8x8xf32> to vector<1x8x8xf32>
    %59 = vector.extract_strided_slice %13 {offsets = [0, 16], sizes = [8, 8], strides = [1, 1]} : vector<8x64xf32> to vector<8x8xf32>
    %60 = vector.shape_cast %59 : vector<8x8xf32> to vector<1x8x8xf32>
    %61 = vector.extract_strided_slice %13 {offsets = [0, 48], sizes = [8, 8], strides = [1, 1]} : vector<8x64xf32> to vector<8x8xf32>
    %62 = vector.shape_cast %61 : vector<8x8xf32> to vector<1x8x8xf32>
    %cst_28 = arith.constant dense<0.000000e+00> : vector<1x8x8xf32>
    %63 = tpu.matmul %58, %60, %cst_28 {dimension_numbers = #tpu.dot_dimension_numbers<[2], [2], [1], [1], [0, 0, 0, 1, 1, 1], [0], [0]>} : vector<1x8x8xf32>, vector<1x8x8xf32>, vector<1x8x8xf32> -> vector<1x8x8xf32>
    %64 = arith.addf %63, %14 : vector<1x8x8xf32>
    %cst_29 = arith.constant dense<0xFF800000> : vector<1x8xf32>
    %65 = vector.multi_reduction <maximumf>, %64, %cst_29 [2] : vector<1x8x8xf32> to vector<1x8xf32>
    %66 = vector.shape_cast %65 : vector<1x8xf32> to vector<1x8x1xf32>
    %67 = vector.broadcast %66 : vector<1x8x1xf32> to vector<1x8x8xf32>
    %68 = arith.subf %64, %67 : vector<1x8x8xf32>
    %69 = math.exp %68 : vector<1x8x8xf32>
    %cst_30 = arith.constant dense<0.000000e+00> : vector<1x8xf32>
    %70 = vector.multi_reduction <add>, %69, %cst_30 [2] : vector<1x8x8xf32> to vector<1x8xf32>
    %71 = vector.shape_cast %70 : vector<1x8xf32> to vector<1x8x1xf32>
    %cst_31 = arith.constant dense<0.000000e+00> : vector<1x8x8xf32>
    %72 = tpu.matmul %69, %62, %cst_31 {dimension_numbers = #tpu.dot_dimension_numbers<[2], [1], [1], [2], [0, 0, 0, 1, 1, 2], [0], [0]>} : vector<1x8x8xf32>, vector<1x8x8xf32>, vector<1x8x8xf32> -> vector<1x8x8xf32>
    %73 = vector.broadcast %71 : vector<1x8x1xf32> to vector<1x8x8xf32>
    %74 = arith.divf %72, %73 : vector<1x8x8xf32>
    %75 = arith.addf %58, %74 : vector<1x8x8xf32>
    %76 = vector.shape_cast %75 : vector<1x8x8xf32> to vector<8x8xf32>
    %c0_32 = arith.constant 0 : index
    %c16 = arith.constant 16 : index
    %77 = vector.load %arg11[%c0_32, %c16] : memref<8x32xf32, #tpu.memory_space<vmem>>, vector<8x8xf32>
    tpu.vector_store %arg11[%c0_32, %c16], %76 {strides = array<i32>} : memref<8x32xf32, #tpu.memory_space<vmem>>, vector<8x8xf32>,
    %78 = vector.extract_strided_slice %8 {offsets = [0, 24], sizes = [8, 8], strides = [1, 1]} : vector<8x32xf32> to vector<8x8xf32>
    %79 = vector.shape_cast %78 : vector<8x8xf32> to vector<1x8x8xf32>
    %80 = vector.extract_strided_slice %13 {offsets = [0, 24], sizes = [8, 8], strides = [1, 1]} : vector<8x64xf32> to vector<8x8xf32>
    %81 = vector.shape_cast %80 : vector<8x8xf32> to vector<1x8x8xf32>
    %82 = vector.extract_strided_slice %13 {offsets = [0, 56], sizes = [8, 8], strides = [1, 1]} : vector<8x64xf32> to vector<8x8xf32>
    %83 = vector.shape_cast %82 : vector<8x8xf32> to vector<1x8x8xf32>
    %cst_33 = arith.constant dense<0.000000e+00> : vector<1x8x8xf32>
    %84 = tpu.matmul %79, %81, %cst_33 {dimension_numbers = #tpu.dot_dimension_numbers<[2], [2], [1], [1], [0, 0, 0, 1, 1, 1], [0], [0]>} : vector<1x8x8xf32>, vector<1x8x8xf32>, vector<1x8x8xf32> -> vector<1x8x8xf32>
    %85 = arith.addf %84, %14 : vector<1x8x8xf32>
    %cst_34 = arith.constant dense<0xFF800000> : vector<1x8xf32>
    %86 = vector.multi_reduction <maximumf>, %85, %cst_34 [2] : vector<1x8x8xf32> to vector<1x8xf32>
    %87 = vector.shape_cast %86 : vector<1x8xf32> to vector<1x8x1xf32>
    %88 = vector.broadcast %87 : vector<1x8x1xf32> to vector<1x8x8xf32>
    %89 = arith.subf %85, %88 : vector<1x8x8xf32>
    %90 = math.exp %89 : vector<1x8x8xf32>
    %cst_35 = arith.constant dense<0.000000e+00> : vector<1x8xf32>
    %91 = vector.multi_reduction <add>, %90, %cst_35 [2] : vector<1x8x8xf32> to vector<1x8xf32>
    %92 = vector.shape_cast %91 : vector<1x8xf32> to vector<1x8x1xf32>
    %cst_36 = arith.constant dense<0.000000e+00> : vector<1x8x8xf32>
    %93 = tpu.matmul %90, %83, %cst_36 {dimension_numbers = #tpu.dot_dimension_numbers<[2], [1], [1], [2], [0, 0, 0, 1, 1, 2], [0], [0]>} : vector<1x8x8xf32>, vector<1x8x8xf32>, vector<1x8x8xf32> -> vector<1x8x8xf32>
    %94 = vector.broadcast %92 : vector<1x8x1xf32> to vector<1x8x8xf32>
    %95 = arith.divf %93, %94 : vector<1x8x8xf32>
    %96 = arith.addf %79, %95 : vector<1x8x8xf32>
    %97 = vector.shape_cast %96 : vector<1x8x8xf32> to vector<8x8xf32>
    %c0_37 = arith.constant 0 : index
    %c24 = arith.constant 24 : index
    %98 = vector.load %arg11[%c0_37, %c24] : memref<8x32xf32, #tpu.memory_space<vmem>>, vector<8x8xf32>
    tpu.vector_store %arg11[%c0_37, %c24], %97 {strides = array<i32>} : memref<8x32xf32, #tpu.memory_space<vmem>>, vector<8x8xf32>,
    %c0_38 = arith.constant 0 : index
    %c0_39 = arith.constant 0 : index
    %99 = vector.load %arg11[%c0_38, %c0_39] : memref<8x32xf32, #tpu.memory_space<vmem>>, vector<8x32xf32>
    %c0_40 = arith.constant 0 : index
    %c0_41 = arith.constant 0 : index
    %100 = vector.load %arg8[%c0_40, %c0_41] : memref<32x32xf32, #tpu.memory_space<vmem>>, vector<32x32xf32>
    %cst_42 = arith.constant dense<0.000000e+00> : vector<8x32xf32>
    %101 = tpu.matmul %99, %100, %cst_42 {dimension_numbers = #tpu.dot_dimension_numbers<[1], [0], [0], [1], [0, 0, 1, 1], [], []>} : vector<8x32xf32>, vector<32x32xf32>, vector<8x32xf32> -> vector<8x32xf32>
    %c0_43 = arith.constant 0 : index
    %c0_44 = arith.constant 0 : index
    %102 = vector.load %arg9[%c0_43, %c0_44] : memref<1x32xf32, #tpu.memory_space<vmem>>, vector<1x32xf32>
    %103 = vector.broadcast %102 : vector<1x32xf32> to vector<8x32xf32>
    %104 = arith.addf %101, %103 : vector<8x32xf32>
    %cst_45 = arith.constant 0.000000e+00 : f32
    %105 = vector.broadcast %cst_45 : f32 to vector<8x32xf32>
    %106 = arith.maximumf %104, %105 : vector<8x32xf32>
    %107 = arith.addf %99, %106 : vector<8x32xf32>
    %108 = vector.shape_cast %107 : vector<8x32xf32> to vector<1x8x32xf32>
    %c0_46 = arith.constant 0 : index
    %c0_47 = arith.constant 0 : index
    %c0_48 = arith.constant 0 : index
    %109 = vector.load %arg10[%c0_46, %c0_47, %c0_48] : memref<1x8x32xf32, #tpu.memory_space<vmem>>, vector<1x8x32xf32>
    tpu.vector_store %arg10[%c0_46, %c0_47, %c0_48], %108 {strides = array<i32>} : memref<1x8x32xf32, #tpu.memory_space<vmem>>, vector<1x8x32xf32>,
    return
  }
  func.func @transform_0(%arg0: i32) -> (i32, i32, i32) {
    %c0_i32 = arith.constant 0 : i32
    %c0_i32_0 = arith.constant 0 : i32
    %c0_i32_1 = arith.constant 0 : i32
    return %arg0, %c0_i32, %c0_i32_0 : i32, i32, i32
  }
  func.func @transform_1(%arg0: i32) -> (i32, i32, i32) {
    %c0_i32 = arith.constant 0 : i32
    %c0_i32_0 = arith.constant 0 : i32
    %c0_i32_1 = arith.constant 0 : i32
    return %arg0, %c0_i32, %c0_i32_0 : i32, i32, i32
  }
  func.func @transform_2(%arg0: i32) -> (i32, i32, i32) {
    %c0_i32 = arith.constant 0 : i32
    %c0_i32_0 = arith.constant 0 : i32
    %c0_i32_1 = arith.constant 0 : i32
    return %arg0, %c0_i32, %c0_i32_0 : i32, i32, i32
  }
  func.func @transform_3(%arg0: i32) -> (i32, i32) {
    %c0_i32 = arith.constant 0 : i32
    %c0_i32_0 = arith.constant 0 : i32
    %c0_i32_1 = arith.constant 0 : i32
    return %c0_i32, %c0_i32_0 : i32, i32
  }
  func.func @transform_4(%arg0: i32) -> (i32, i32) {
    %c0_i32 = arith.constant 0 : i32
    %c0_i32_0 = arith.constant 0 : i32
    %c0_i32_1 = arith.constant 0 : i32
    return %c0_i32, %c0_i32_0 : i32, i32
  }
  func.func @transform_5(%arg0: i32) -> (i32, i32) {
    %c0_i32 = arith.constant 0 : i32
    %c0_i32_0 = arith.constant 0 : i32
    %c0_i32_1 = arith.constant 0 : i32
    return %c0_i32, %c0_i32_0 : i32, i32
  }
  func.func @transform_6(%arg0: i32) -> (i32, i32) {
    %c0_i32 = arith.constant 0 : i32
    %c0_i32_0 = arith.constant 0 : i32
    %c0_i32_1 = arith.constant 0 : i32
    return %c0_i32, %c0_i32_0 : i32, i32
  }
  func.func @transform_7(%arg0: i32) -> (i32, i32) {
    %c0_i32 = arith.constant 0 : i32
    %c0_i32_0 = arith.constant 0 : i32
    %c0_i32_1 = arith.constant 0 : i32
    return %c0_i32, %c0_i32_0 : i32, i32
  }
  func.func @transform_8(%arg0: i32) -> (i32, i32) {
    %c0_i32 = arith.constant 0 : i32
    %c0_i32_0 = arith.constant 0 : i32
    %c0_i32_1 = arith.constant 0 : i32
    return %c0_i32, %c0_i32_0 : i32, i32
  }
  func.func @transform_9(%arg0: i32) -> (i32, i32, i32) {
    %c0_i32 = arith.constant 0 : i32
    %c0_i32_0 = arith.constant 0 : i32
    %c0_i32_1 = arith.constant 0 : i32
    return %arg0, %c0_i32, %c0_i32_0 : i32, i32, i32
  }
}

</mosaic_0001>

<llo_original>
// kernel: tpu_custom_call.1
$region0: #{tpu_custom_call.1}
  #allocation0 [shape = 'u32[]', space=smem, size = 0x4, offset = 0x4, fixed_abs, tag = 'smem constant byte address 0x4 - core index']
  #allocation1 [shape = 'u32[144,128]{1,0:T(1,128)}', space=vmem, size = 0x12000, scoped, tag = 'internal scratch']
  #allocation2 [shape = 'f32[8,32]{1,0:T(8,128)}', space=vmem, size = 0x1000, scoped, tag = 'scratch operand']
  %s0 = inlined_call_operand.hbm [shape: f32[2,8,16], index: 0, kind: input, shape index: {}]
  %s1 = inlined_call_operand.hbm [shape: f32[2,8,16], index: 1, kind: input, shape index: {}]
  %s2 = inlined_call_operand.hbm [shape: f32[2,8,8], index: 2, kind: input, shape index: {}]
  %s3 = inlined_call_operand.hbm [shape: f32[16,32], index: 3, kind: input, shape index: {}]
  %s4 = inlined_call_operand.vmem [shape: f32[1,32], index: 4, kind: input, shape index: {}]
  %s5 = inlined_call_operand.vmem [shape: f32[16,64], index: 5, kind: input, shape index: {}]
  %s6 = inlined_call_operand.vmem [shape: f32[1,64], index: 6, kind: input, shape index: {}]
  %s7 = inlined_call_operand.hbm [shape: f32[32,32], index: 7, kind: input, shape index: {}]
  %s8 = inlined_call_operand.vmem [shape: f32[1,32], index: 8, kind: input, shape index: {}]
  %s9 = inlined_call_operand.hbm [shape: f32[2,8,32], index: 9, kind: output, shape index: {}]
  %s10 = sld [smem:[#allocation0]]
  $region89: #{tpu_custom_call.1} parent=0
    _
  %s12 = ssub.s32 1, %s10
  %s13 = scalar_select 0, %s12, %s10
  $region1: #{tpu_custom_call.1} parent=0
    #allocation3 [shape = 'u8[8192]{0}', space=vmem, size = 0x2000, scoped, tag = 'input window, operand 0']
    #allocation4 [shape = 's32[2]{0}', space=sflag, size = 0x8, scoped, tag = 'scoped memory for tpu_custom_call.1']
    #allocation5 [shape = 's32[2]{0}', space=sflag, size = 0x8, scoped, tag = 'scoped memory for tpu_custom_call.1']
    #allocation6 [shape = 'u8[8192]{0}', space=vmem, size = 0x2000, scoped, tag = 'input window, operand 1']
    #allocation7 [shape = 's32[2]{0}', space=sflag, size = 0x8, scoped, tag = 'scoped memory for tpu_custom_call.1']
    #allocation8 [shape = 'u8[8192]{0}', space=vmem, size = 0x2000, scoped, tag = 'input window, operand 2']
    #allocation9 [shape = 'u8[8192]{0}', space=vmem, size = 0x2000, scoped, tag = 'input window, operand 3, single buffered']
    #allocation10 [shape = 's32[1]{0}', space=sflag, size = 0x4, scoped, tag = 'scoped memory for tpu_custom_call.1']
    #allocation11 [shape = 'u8[16384]{0}', space=vmem, size = 0x4000, scoped, tag = 'input window, operand 7, single buffered']
    #allocation12 [shape = 'u8[8192]{0}', space=vmem, size = 0x2000, scoped, tag = 'output window, operand 0']
    %14 = vsyncpa [#allocation4], 0
    %s15 = scalar_lea.sflag [#allocation4], 1
    %16 = vsyncpa %s15, 0
    %17 = vsyncpa [#allocation7], 0
    %s18 = scalar_lea.sflag [#allocation7], 1
    %19 = vsyncpa %s18, 0
    %20 = vsyncpa [#allocation10], 0
    %21 = vsyncpa [#allocation5], 0
    %s22 = scalar_lea.sflag [#allocation5], 1
    %23 = vsyncpa %s22, 0
    loop: start=0, step=1, limit=4
    $region2: #{tpu_custom_call.1} parent=1 // loop_pre_header
      _
    $region3: #{tpu_custom_call.1} parent=1 // loop_header
      %s25 = sphi 0, %s29
      %p26 = scmp.ge.s32.totalorder %s25, 4
      %s35 = sphi 0, %s37
      %s38 = sphi 0, %s35
      %s39 = sphi 0, %s38
      %s55 = sphi 0, %s39
      %s61 = sphi 0, %s63
      %s64 = sphi 0, %s61
      %s65 = sphi 0, %s64
      %s81 = sphi 0, %s65
      %s87 = sphi 0, %s89
      %s90 = sphi 0, %s87
      %s91 = sphi 0, %s90
      %s107 = sphi 0, %s91
      %s111 = sphi 0, %s111
      %s113 = sphi 0, %s111
      %s114 = sphi 0, %s113
      %s128 = sphi 0, %s114
      %s132 = sphi 0, %s132
      %s134 = sphi 0, %s132
      %s135 = sphi 0, %s134
      %s149 = sphi 0, %s135
      %s153 = sphi 0, %s153
      %s155 = sphi 0, %s153
      %s156 = sphi 0, %s155
      %s170 = sphi 0, %s156
      %s174 = sphi 0, %s174
      %s176 = sphi 0, %s174
      %s177 = sphi 0, %s176
      %s191 = sphi 0, %s177
      %s195 = sphi 0, %s195
      %s197 = sphi 0, %s195
      %s198 = sphi 0, %s197
      %s212 = sphi 0, %s198
      %s216 = sphi 0, %s216
      %s218 = sphi 0, %s216
      %s219 = sphi 0, %s218
      %s233 = sphi 0, %s219
      %s239 = sphi 0, %s241
      %s242 = sphi 0, %s239
      %s243 = sphi 0, %s242
      %s259 = sphi 0, %s243
    $region4: #{tpu_custom_call.1} parent=1 // loop_header_branch
      %28 = sbr.rel (%p26) target = $region8
    $region5: #{tpu_custom_call.1} parent=1 // loop_body
      %s30 = ssub.s32 %s25, 1
      %s31 = ssub.s32 %s25, 2
      %s32 = sadd.s32 %s25, 1
      %s33 = ssub.s32 %s25, %s32
      %p34 = scmp.eq.s32.totalorder %s33, 0
      %s36 = sadd.s32 %s35, 1
      %s37 = scalar_select %p34, %s35, %s36
      %p40 = pneg %p34
      %p41 = scmp.eq.s32.totalorder %s25, 1
      %p42 = por %p40, %p41
      %p43 = scmp.ne.s32.totalorder %s35, %s38
      %p44 = scmp.eq.s32.totalorder %s25, 0
      %p45 = por %p43, %p44
      %p46 = scmp.ne.s32.totalorder %s35, %s38
      %p47 = scmp.eq.s32.totalorder %s30, 1
      %p48 = por %p46, %p47
      %p49 = scmp.ne.s32.totalorder %s38, %s39
      %p50 = scmp.eq.s32.totalorder %s30, 0
      %p51 = por %p49, %p50
      %p52 = scmp.ne.s32.totalorder %s38, %s39
      %p53 = scmp.eq.s32.totalorder %s31, 1
      %p54 = por %p52, %p53
      %p56 = scmp.ne.s32.totalorder %s39, %s55
      %p57 = scmp.eq.s32.totalorder %s31, 0
      %p58 = por %p56, %p57
      %s59 = ssub.s32 %s25, %s32
      %p60 = scmp.eq.s32.totalorder %s59, 0
      %s62 = sadd.s32 %s61, 1
      %s63 = scalar_select %p60, %s61, %s62
      %p66 = pneg %p60
      %p67 = scmp.eq.s32.totalorder %s25, 1
      %p68 = por %p66, %p67
      %p69 = scmp.ne.s32.totalorder %s61, %s64
      %p70 = scmp.eq.s32.totalorder %s25, 0
      %p71 = por %p69, %p70
      %p72 = scmp.ne.s32.totalorder %s61, %s64
      %p73 = scmp.eq.s32.totalorder %s30, 1
      %p74 = por %p72, %p73
      %p75 = scmp.ne.s32.totalorder %s64, %s65
      %p76 = scmp.eq.s32.totalorder %s30, 0
      %p77 = por %p75, %p76
      %p78 = scmp.ne.s32.totalorder %s64, %s65
      %p79 = scmp.eq.s32.totalorder %s31, 1
      %p80 = por %p78, %p79
      %p82 = scmp.ne.s32.totalorder %s65, %s81
      %p83 = scmp.eq.s32.totalorder %s31, 0
      %p84 = por %p82, %p83
      %s85 = ssub.s32 %s25, %s32
      %p86 = scmp.eq.s32.totalorder %s85, 0
      %s88 = sadd.s32 %s87, 1
      %s89 = scalar_select %p86, %s87, %s88
      %p92 = pneg %p86
      %p93 = scmp.eq.s32.totalorder %s25, 1
      %p94 = por %p92, %p93
      %p95 = scmp.ne.s32.totalorder %s87, %s90
      %p96 = scmp.eq.s32.totalorder %s25, 0
      %p97 = por %p95, %p96
      %p98 = scmp.ne.s32.totalorder %s87, %s90
      %p99 = scmp.eq.s32.totalorder %s30, 1
      %p100 = por %p98, %p99
      %p101 = scmp.ne.s32.totalorder %s90, %s91
      %p102 = scmp.eq.s32.totalorder %s30, 0
      %p103 = por %p101, %p102
      %p104 = scmp.ne.s32.totalorder %s90, %s91
      %p105 = scmp.eq.s32.totalorder %s31, 1
      %p106 = por %p104, %p105
      %p108 = scmp.ne.s32.totalorder %s91, %s107
      %p109 = scmp.eq.s32.totalorder %s31, 0
      %p110 = por %p108, %p109
      %s112 = sadd.s32 %s111, 1
      %p115 = scmp.eq.s32.totalorder %s25, 1
      %p116 = scmp.ne.s32.totalorder %s111, %s113
      %p117 = scmp.eq.s32.totalorder %s25, 0
      %p118 = por %p116, %p117
      %p119 = scmp.ne.s32.totalorder %s111, %s113
      %p120 = scmp.eq.s32.totalorder %s30, 1
      %p121 = por %p119, %p120
      %p122 = scmp.ne.s32.totalorder %s113, %s114
      %p123 = scmp.eq.s32.totalorder %s30, 0
      %p124 = por %p122, %p123
      %p125 = scmp.ne.s32.totalorder %s113, %s114
      %p126 = scmp.eq.s32.totalorder %s31, 1
      %p127 = por %p125, %p126
      %p129 = scmp.ne.s32.totalorder %s114, %s128
      %p130 = scmp.eq.s32.totalorder %s31, 0
      %p131 = por %p129, %p130
      %s133 = sadd.s32 %s132, 1
      %p136 = scmp.eq.s32.totalorder %s25, 1
      %p137 = scmp.ne.s32.totalorder %s132, %s134
      %p138 = scmp.eq.s32.totalorder %s25, 0
      %p139 = por %p137, %p138
      %p140 = scmp.ne.s32.totalorder %s132, %s134
      %p141 = scmp.eq.s32.totalorder %s30, 1
      %p142 = por %p140, %p141
      %p143 = scmp.ne.s32.totalorder %s134, %s135
      %p144 = scmp.eq.s32.totalorder %s30, 0
      %p145 = por %p143, %p144
      %p146 = scmp.ne.s32.totalorder %s134, %s135
      %p147 = scmp.eq.s32.totalorder %s31, 1
      %p148 = por %p146, %p147
      %p150 = scmp.ne.s32.totalorder %s135, %s149
      %p151 = scmp.eq.s32.totalorder %s31, 0
      %p152 = por %p150, %p151
      %s154 = sadd.s32 %s153, 1
      %p157 = scmp.eq.s32.totalorder %s25, 1
      %p158 = scmp.ne.s32.totalorder %s153, %s155
      %p159 = scmp.eq.s32.totalorder %s25, 0
      %p160 = por %p158, %p159
      %p161 = scmp.ne.s32.totalorder %s153, %s155
      %p162 = scmp.eq.s32.totalorder %s30, 1
      %p163 = por %p161, %p162
      %p164 = scmp.ne.s32.totalorder %s155, %s156
      %p165 = scmp.eq.s32.totalorder %s30, 0
      %p166 = por %p164, %p165
      %p167 = scmp.ne.s32.totalorder %s155, %s156
      %p168 = scmp.eq.s32.totalorder %s31, 1
      %p169 = por %p167, %p168
      %p171 = scmp.ne.s32.totalorder %s156, %s170
      %p172 = scmp.eq.s32.totalorder %s31, 0
      %p173 = por %p171, %p172
      %s175 = sadd.s32 %s174, 1
      %p178 = scmp.eq.s32.totalorder %s25, 1
      %p179 = scmp.ne.s32.totalorder %s174, %s176
      %p180 = scmp.eq.s32.totalorder %s25, 0
      %p181 = por %p179, %p180
      %p182 = scmp.ne.s32.totalorder %s174, %s176
      %p183 = scmp.eq.s32.totalorder %s30, 1
      %p184 = por %p182, %p183
      %p185 = scmp.ne.s32.totalorder %s176, %s177
      %p186 = scmp.eq.s32.totalorder %s30, 0
      %p187 = por %p185, %p186
      %p188 = scmp.ne.s32.totalorder %s176, %s177
      %p189 = scmp.eq.s32.totalorder %s31, 1
      %p190 = por %p188, %p189
      %p192 = scmp.ne.s32.totalorder %s177, %s191
      %p193 = scmp.eq.s32.totalorder %s31, 0
      %p194 = por %p192, %p193
      %s196 = sadd.s32 %s195, 1
      %p199 = scmp.eq.s32.totalorder %s25, 1
      %p200 = scmp.ne.s32.totalorder %s195, %s197
      %p201 = scmp.eq.s32.totalorder %s25, 0
      %p202 = por %p200, %p201
      %p203 = scmp.ne.s32.totalorder %s195, %s197
      %p204 = scmp.eq.s32.totalorder %s30, 1
      %p205 = por %p203, %p204
      %p206 = scmp.ne.s32.totalorder %s197, %s198
      %p207 = scmp.eq.s32.totalorder %s30, 0
      %p208 = por %p206, %p207
      %p209 = scmp.ne.s32.totalorder %s197, %s198
      %p210 = scmp.eq.s32.totalorder %s31, 1
      %p211 = por %p209, %p210
      %p213 = scmp.ne.s32.totalorder %s198, %s212
      %p214 = scmp.eq.s32.totalorder %s31, 0
      %p215 = por %p213, %p214
      %s217 = sadd.s32 %s216, 1
      %p220 = scmp.eq.s32.totalorder %s25, 1
      %p221 = scmp.ne.s32.totalorder %s216, %s218
      %p222 = scmp.eq.s32.totalorder %s25, 0
      %p223 = por %p221, %p222
      %p224 = scmp.ne.s32.totalorder %s216, %s218
      %p225 = scmp.eq.s32.totalorder %s30, 1
      %p226 = por %p224, %p225
      %p227 = scmp.ne.s32.totalorder %s218, %s219
      %p228 = scmp.eq.s32.totalorder %s30, 0
      %p229 = por %p227, %p228
      %p230 = scmp.ne.s32.totalorder %s218, %s219
      %p231 = scmp.eq.s32.totalorder %s31, 1
      %p232 = por %p230, %p231
      %p234 = scmp.ne.s32.totalorder %s219, %s233
      %p235 = scmp.eq.s32.totalorder %s31, 0
      %p236 = por %p234, %p235
      %s237 = ssub.s32 %s25, %s32
      %p238 = scmp.eq.s32.totalorder %s237, 0
      %s240 = sadd.s32 %s239, 1
      %s241 = scalar_select %p238, %s239, %s240
      %p244 = pneg %p238
      %p245 = scmp.eq.s32.totalorder %s25, 1
      %p246 = por %p244, %p245
      %p247 = scmp.ne.s32.totalorder %s239, %s242
      %p248 = scmp.eq.s32.totalorder %s25, 0
      %p249 = por %p247, %p248
      %p250 = scmp.ne.s32.totalorder %s239, %s242
      %p251 = scmp.eq.s32.totalorder %s30, 1
      %p252 = por %p250, %p251
      %p253 = scmp.ne.s32.totalorder %s242, %s243
      %p254 = scmp.eq.s32.totalorder %s30, 0
      %p255 = por %p253, %p254
      %p256 = scmp.ne.s32.totalorder %s242, %s243
      %p257 = scmp.eq.s32.totalorder %s31, 1
      %p258 = por %p256, %p257
      %p260 = scmp.ne.s32.totalorder %s243, %s259
      %p261 = scmp.eq.s32.totalorder %s31, 0
      %p262 = por %p260, %p261
      %p263 = scmp.le.s32.totalorder 1, %s25
      %p264 = scmp.lt.s32.totalorder %s25, 3
      %p265 = pnand %p263, %p264
      %p266 = pneg %p265
      // Predicated region
      $region9: #{tpu_custom_call.1} parent=5 // pred_check
        _
      $region10: #{tpu_custom_call.1} parent=5 // pred_check_branch
        %268 = sbr.rel (%p265) target = $region12
      $region11: #{tpu_custom_call.1} parent=5 // pred_region
        %s269 = ssub.s32 %s25, 1
        // Predicated region
        $region13: #{tpu_custom_call.1} parent=11 // pred_check
          %p270 = pneg %p124
        $region14: #{tpu_custom_call.1} parent=11 // pred_check_branch
          %272 = sbr.rel (%p270) target = $region16
        $region15: #{tpu_custom_call.1} parent=11 // pred_region
          %s274 = ssub.s32 256, 256
          %275 = vsyncadd [#allocation10], %s274
          %s276 = sshll.u32 [#allocation9], 4
          %s277 = int_to_ptr.vmem [resolvable:$true] %s276
          %282 = dma.hbm_to_vmem [thread:$0]  %s3, 256, %s277, [#allocation10], 128, 128, 8
        $region16: #{tpu_custom_call.1} parent=11 // pred_fallthru
          _
        // Predicated region
        $region17: #{tpu_custom_call.1} parent=11 // pred_check
          %p283 = pneg %p145
        $region18: #{tpu_custom_call.1} parent=11 // pred_check_branch
          %285 = sbr.rel (%p283) target = $region20
        $region19: #{tpu_custom_call.1} parent=11 // pred_region
          _
        $region20: #{tpu_custom_call.1} parent=11 // pred_fallthru
          _
        // Predicated region
        $region21: #{tpu_custom_call.1} parent=11 // pred_check
          %p286 = pneg %p166
        $region22: #{tpu_custom_call.1} parent=11 // pred_check_branch
          %288 = sbr.rel (%p286) target = $region24
        $region23: #{tpu_custom_call.1} parent=11 // pred_region
          _
        $region24: #{tpu_custom_call.1} parent=11 // pred_fallthru
          _
        // Predicated region
        $region25: #{tpu_custom_call.1} parent=11 // pred_check
          %p289 = pneg %p187
        $region26: #{tpu_custom_call.1} parent=11 // pred_check_branch
          %291 = sbr.rel (%p289) target = $region28
        $region27: #{tpu_custom_call.1} parent=11 // pred_region
          _
        $region28: #{tpu_custom_call.1} parent=11 // pred_fallthru
          _
        // Predicated region
        $region29: #{tpu_custom_call.1} parent=11 // pred_check
          %p292 = pneg %p208
        $region30: #{tpu_custom_call.1} parent=11 // pred_check_branch
          %294 = sbr.rel (%p292) target = $region32
        $region31: #{tpu_custom_call.1} parent=11 // pred_region
          %s296 = ssub.s32 512, 512
          %297 = vsyncadd [#allocation10], %s296
          %s298 = sshll.u32 [#allocation11], 4
          %s299 = int_to_ptr.vmem [resolvable:$true] %s298
          %304 = dma.hbm_to_vmem [thread:$0]  %s7, 512, %s299, [#allocation10], 128, 128, 8
        $region32: #{tpu_custom_call.1} parent=11 // pred_fallthru
          _
        // Predicated region
        $region33: #{tpu_custom_call.1} parent=11 // pred_check
          %p305 = pneg %p229
        $region34: #{tpu_custom_call.1} parent=11 // pred_check_branch
          %307 = sbr.rel (%p305) target = $region36
        $region35: #{tpu_custom_call.1} parent=11 // pred_region
          _
        $region36: #{tpu_custom_call.1} parent=11 // pred_fallthru
          _
      $region12: #{tpu_custom_call.1} parent=5 // pred_fallthru
        _
      %p308 = scmp.lt.s32.totalorder %s25, 2
      // Predicated region
      $region37: #{tpu_custom_call.1} parent=5 // pred_check
        %p309 = pneg %p308
      $region38: #{tpu_custom_call.1} parent=5 // pred_check_branch
        %311 = sbr.rel (%p309) target = $region40
      $region39: #{tpu_custom_call.1} parent=5 // pred_region
        // Predicated region
        $region41: #{tpu_custom_call.1} parent=39 // pred_check
          %p312 = pneg %p45
        $region42: #{tpu_custom_call.1} parent=39 // pred_check_branch
          %314 = sbr.rel (%p312) target = $region44
        $region43: #{tpu_custom_call.1} parent=39 // pred_region
          %s315 = sand.u32 %s35, 1
          %s316 = scalar_lea.sflag [#allocation4], %s315
          %s317 = sand.u32 %s35, 1
          %s318 = smul.addr %s317, 8
          %s319 = scalar_lea.vmem [#allocation3], %s318
          %s321 = ssub.s32 128, 128
          %322 = vsyncadd %s316, %s321
          %s323 = smul.addr %s25, 128
          %s324 = scalar_lea.hbm %s0, %s323
          %s326 = sshll.u32 %s319, 4
          %s327 = int_to_ptr.vmem [resolvable:$true] %s326
          %329 = dma.hbm_to_vmem [thread:$0]  %s324, 128, %s327, %s316
        $region44: #{tpu_custom_call.1} parent=39 // pred_fallthru
          _
        // Predicated region
        $region45: #{tpu_custom_call.1} parent=39 // pred_check
          %p330 = pneg %p71
        $region46: #{tpu_custom_call.1} parent=39 // pred_check_branch
          %332 = sbr.rel (%p330) target = $region48
        $region47: #{tpu_custom_call.1} parent=39 // pred_region
          %s333 = sand.u32 %s25, 1
          %s334 = scalar_lea.sflag [#allocation7], %s333
          %s335 = sand.u32 %s61, 1
          %s336 = smul.addr %s335, 8
          %s337 = scalar_lea.vmem [#allocation6], %s336
          %s339 = ssub.s32 128, 128
          %340 = vsyncadd %s334, %s339
          %s341 = smul.addr %s25, 128
          %s342 = scalar_lea.hbm %s1, %s341
          %s344 = sshll.u32 %s337, 4
          %s345 = int_to_ptr.vmem [resolvable:$true] %s344
          %347 = dma.hbm_to_vmem [thread:$0]  %s342, 128, %s345, %s334
        $region48: #{tpu_custom_call.1} parent=39 // pred_fallthru
          _
        // Predicated region
        $region49: #{tpu_custom_call.1} parent=39 // pred_check
          %p348 = pneg %p97
        $region50: #{tpu_custom_call.1} parent=39 // pred_check_branch
          %350 = sbr.rel (%p348) target = $region52
        $region51: #{tpu_custom_call.1} parent=39 // pred_region
          %s351 = sand.u32 %s25, 1
          %s352 = scalar_lea.sflag [#allocation7], %s351
          %s353 = sand.u32 %s87, 1
          %s354 = smul.addr %s353, 8
          %s355 = scalar_lea.vmem [#allocation8], %s354
          %s357 = ssub.s32 128, 128
          %358 = vsyncadd %s352, %s357
          %s359 = smul.addr %s25, 128
          %s360 = scalar_lea.hbm %s2, %s359
          %s362 = sshll.u32 %s355, 4
          %s363 = int_to_ptr.vmem [resolvable:$true] %s362
          %365 = dma.hbm_to_vmem [thread:$0]  %s360, 128, %s363, %s352
        $region52: #{tpu_custom_call.1} parent=39 // pred_fallthru
          _
      $region40: #{tpu_custom_call.1} parent=5 // pred_fallthru
        _
      %p366 = scmp.le.s32.totalorder 1, %s25
      %p367 = scmp.lt.s32.totalorder %s25, 3
      %p368 = pnand %p366, %p367
      %p369 = pneg %p368
      // Predicated region
      $region53: #{tpu_custom_call.1} parent=5 // pred_check
        _
      $region54: #{tpu_custom_call.1} parent=5 // pred_check_branch
        %371 = sbr.rel (%p368) target = $region56
      $region55: #{tpu_custom_call.1} parent=5 // pred_region
        %s372 = ssub.s32 %s25, 1
        %s373 = sand.u32 %s38, 1
        %s374 = scalar_lea.sflag [#allocation4], %s373
        %s375 = sand.u32 %s38, 1
        %s376 = smul.addr %s375, 8
        %s377 = scalar_lea.vmem [#allocation3], %s376
        // Predicated region
        $region57: #{tpu_custom_call.1} parent=55 // pred_check
          %p378 = pneg %p51
        $region58: #{tpu_custom_call.1} parent=55 // pred_check_branch
          %380 = sbr.rel (%p378) target = $region60
        $region59: #{tpu_custom_call.1} parent=55 // pred_region
          %381 = dma.done %s374, 128
        $region60: #{tpu_custom_call.1} parent=55 // pred_fallthru
          _
        %s382 = sand.u32 %s30, 1
        %s383 = scalar_lea.sflag [#allocation7], %s382
        %s384 = sand.u32 %s64, 1
        %s385 = smul.addr %s384, 8
        %s386 = scalar_lea.vmem [#allocation6], %s385
        // Predicated region
        $region61: #{tpu_custom_call.1} parent=55 // pred_check
          %p387 = pneg %p77
        $region62: #{tpu_custom_call.1} parent=55 // pred_check_branch
          %389 = sbr.rel (%p387) target = $region64
        $region63: #{tpu_custom_call.1} parent=55 // pred_region
          %390 = dma.done %s383, 128
        $region64: #{tpu_custom_call.1} parent=55 // pred_fallthru
          _
        %s391 = sand.u32 %s30, 1
        %s392 = scalar_lea.sflag [#allocation7], %s391
        %s393 = sand.u32 %s90, 1
        %s394 = smul.addr %s393, 8
        %s395 = scalar_lea.vmem [#allocation8], %s394
        // Predicated region
        $region65: #{tpu_custom_call.1} parent=55 // pred_check
          %p396 = pneg %p103
        $region66: #{tpu_custom_call.1} parent=55 // pred_check_branch
          %398 = sbr.rel (%p396) target = $region68
        $region67: #{tpu_custom_call.1} parent=55 // pred_region
          %399 = dma.done %s392, 128
        $region68: #{tpu_custom_call.1} parent=55 // pred_fallthru
          _
        // Predicated region
        $region69: #{tpu_custom_call.1} parent=55 // pred_check
          %p400 = pneg %p124
        $region70: #{tpu_custom_call.1} parent=55 // pred_check_branch
          %402 = sbr.rel (%p400) target = $region72
        $region71: #{tpu_custom_call.1} parent=55 // pred_region
          %403 = dma.done [#allocation10], 256
        $region72: #{tpu_custom_call.1} parent=55 // pred_fallthru
          _
        // Predicated region
        $region73: #{tpu_custom_call.1} parent=55 // pred_check
          %p404 = pneg %p208
        $region74: #{tpu_custom_call.1} parent=55 // pred_check_branch
          %406 = sbr.rel (%p404) target = $region76
        $region75: #{tpu_custom_call.1} parent=55 // pred_region
          %407 = dma.done [#allocation10], 512
        $region76: #{tpu_custom_call.1} parent=55 // pred_fallthru
          _
        %s408 = sand.u32 %s38, 1
        %s409 = scalar_lea.sflag [#allocation4], %s408
        %s410 = sand.u32 %s38, 1
        %s411 = smul.addr %s410, 8
        %s412 = scalar_lea.vmem [#allocation3], %s411
        %p413 = pneg %p51
        %p414 = pneg %p48
        %s415 = sand.u32 %s30, 1
        %s416 = scalar_lea.sflag [#allocation7], %s415
        %s417 = sand.u32 %s64, 1
        %s418 = smul.addr %s417, 8
        %s419 = scalar_lea.vmem [#allocation6], %s418
        %p420 = pneg %p77
        %p421 = pneg %p74
        %s422 = sand.u32 %s30, 1
        %s423 = scalar_lea.sflag [#allocation7], %s422
        %s424 = sand.u32 %s90, 1
        %s425 = smul.addr %s424, 8
        %s426 = scalar_lea.vmem [#allocation8], %s425
        %p427 = pneg %p103
        %p428 = pneg %p100
        %p429 = pneg %p124
        %p430 = pneg %p121
        %p431 = pneg %p145
        %p432 = pneg %p142
        %p433 = pneg %p166
        %p434 = pneg %p163
        %p435 = pneg %p187
        %p436 = pneg %p184
        %p437 = pneg %p208
        %p438 = pneg %p205
        %p439 = pneg %p229
        %p440 = pneg %p226
        %p441 = pneg %p255
        %p442 = pneg %p252
        %s443 = sand.u32 %s242, 1
        %s444 = scalar_lea.sflag [#allocation5], %s443
        %s445 = sand.u32 %s242, 1
        %s446 = smul.addr %s445, 8
        %s447 = scalar_lea.vmem [#allocation12], %s446
        %v448 = vld [vmem:[%s377] sm:$0xff]
        %v449 = vld [vmem:[%s386] sm:$0xff]
        %v450 = vld [vmem:[#allocation9] sm:$0xff]
        %v451 = vld [vmem:[#allocation9 + $0x8] sm:$0xff]
        %v452 = vld [vmem:[%s4] sm:$0x1]
        %v454 = vlaneseq
        %v455 = vshrl.u32 %v454, 7
        %v456 = vsub.s32 0, %v455
        %v457 = vrot.slane %v452, %v456
        %vm459 = vcmask 130048
        %v461 = vsel %vm459, %v448, 0
        %463 = vmatprep.subr.mxu0 0.0
        %464 = vmatpush1.msra.mxu0 %v450
        %465 = vmatprep.subr.mxu0 0.0
        %466 = vmatpush1.msra.mxu0 %v451
        %467 = vmatprep.subr.mxu0 0.0
        %468 = vmatpush1.msra.mxu0 0.0
        %469 = vmatprep.subr.mxu0 0.0
        %470 = vmatpush1.msra.mxu0 0.0
        %471 = vmatprep.subr.mxu0 0.0
        %472 = vmatpush1.msra.mxu0 0.0
        %473 = vmatprep.subr.mxu0 0.0
        %474 = vmatpush1.msra.mxu0 0.0
        %475 = vmatprep.subr.mxu0 0.0
        %476 = vmatpush1.msra.mxu0 0.0
        %477 = vmatprep.subr.mxu0 0.0
        %478 = vmatpush1.msra.mxu0 0.0
        %479 = vmatprep.subr.mxu0 0.0
        %480 = vmatpush1.msra.mxu0 0.0
        %481 = vmatprep.subr.mxu0 0.0
        %482 = vmatpush1.msra.mxu0 0.0
        %483 = vmatprep.subr.mxu0 0.0
        %484 = vmatpush1.msra.mxu0 0.0
        %485 = vmatprep.subr.mxu0 0.0
        %486 = vmatpush1.msra.mxu0 0.0
        %487 = vmatprep.subr.mxu0 0.0
        %488 = vmatpush1.msra.mxu0 0.0
        %489 = vmatprep.subr.mxu0 0.0
        %490 = vmatpush1.msra.mxu0 0.0
        %491 = vmatprep.subr.mxu0 0.0
        %492 = vmatpush1.msra.mxu0 0.0
        %493 = vmatprep.subr.mxu0 0.0
        %494 = vmatpush1.msra.mxu0 0.0
        %495 = vmatprep.subr.mxu0 0.0
        %496 = vmatpush1.msra.mxu0 0.0
        %497 = vmatprep.subr.mxu0 0.0
        %498 = vmatpush1.msra.mxu0 0.0
        %499 = vmatprep.subr.mxu0 0.0
        %500 = vmatpush1.msra.mxu0 0.0
        %501 = vmatprep.subr.mxu0 0.0
        %502 = vmatpush1.msra.mxu0 0.0
        %503 = vmatprep.subr.mxu0 0.0
        %504 = vmatpush1.msra.mxu0 0.0
        %505 = vmatprep.subr.mxu0 0.0
        %506 = vmatpush1.msra.mxu0 0.0
        %507 = vmatprep.subr.mxu0 0.0
        %508 = vmatpush1.msra.mxu0 0.0
        %509 = vmatprep.subr.mxu0 0.0
        %510 = vmatpush1.msra.mxu0 0.0
        %511 = vmatprep.subr.mxu0 0.0
        %512 = vmatpush1.msra.mxu0 0.0
        %513 = vmatprep.subr.mxu0 0.0
        %514 = vmatpush1.msra.mxu0 0.0
        %515 = vmatprep.subr.mxu0 0.0
        %516 = vmatpush1.msra.mxu0 0.0
        %517 = vmatprep.subr.mxu0 0.0
        %518 = vmatpush1.msra.mxu0 0.0
        %519 = vmatprep.subr.mxu0 0.0
        %520 = vmatpush1.msra.mxu0 0.0
        %521 = vmatprep.subr.mxu0 0.0
        %522 = vmatpush1.msra.mxu0 0.0
        %523 = vmatprep.subr.mxu0 0.0
        %524 = vmatpush1.msra.mxu0 0.0
        %525 = vmatprep.subr.mxu0 0.0
        %526 = vmatpush1.msra.mxu0 0.0
        %527 = vmatprep.mubr.f32.mxu0 0.0
        %528 = vmatmul.mubr.f32.gmra.mrb[0].mxu0 %v461
        %v529 = vpop.f32.mrb[0].mxu0
        %v530 = vadd.f32 %v457, %v529
        %v531 = vpop.f32.mrb[0].mxu0
        %532 = vdwg.mxu0
        %v533 = vld [vmem:[%s5] sm:$0xff]
        %v534 = vld [vmem:[%s5 + $0x8] sm:$0xff]
        %v535 = vld [vmem:[%s6] sm:$0x1]
        %v537 = vlaneseq
        %v538 = vshrl.u32 %v537, 7
        %v539 = vsub.s32 0, %v538
        %v540 = vrot.slane %v535, %v539
        %v543 = vsel %vm459, %v449, 0
        %545 = vmatprep.subr.mxu0 0.0
        %546 = vmatpush1.msra.mxu0 %v533
        %547 = vmatprep.subr.mxu0 0.0
        %548 = vmatpush1.msra.mxu0 %v534
        %549 = vmatprep.subr.mxu0 0.0
        %550 = vmatpush1.msra.mxu0 0.0
        %551 = vmatprep.subr.mxu0 0.0
        %552 = vmatpush1.msra.mxu0 0.0
        %553 = vmatprep.subr.mxu0 0.0
        %554 = vmatpush1.msra.mxu0 0.0
        %555 = vmatprep.subr.mxu0 0.0
        %556 = vmatpush1.msra.mxu0 0.0
        %557 = vmatprep.subr.mxu0 0.0
        %558 = vmatpush1.msra.mxu0 0.0
        %559 = vmatprep.subr.mxu0 0.0
        %560 = vmatpush1.msra.mxu0 0.0
        %561 = vmatprep.subr.mxu0 0.0
        %562 = vmatpush1.msra.mxu0 0.0
        %563 = vmatprep.subr.mxu0 0.0
        %564 = vmatpush1.msra.mxu0 0.0
        %565 = vmatprep.subr.mxu0 0.0
        %566 = vmatpush1.msra.mxu0 0.0
        %567 = vmatprep.subr.mxu0 0.0
        %568 = vmatpush1.msra.mxu0 0.0
        %569 = vmatprep.subr.mxu0 0.0
        %570 = vmatpush1.msra.mxu0 0.0
        %571 = vmatprep.subr.mxu0 0.0
        %572 = vmatpush1.msra.mxu0 0.0
        %573 = vmatprep.subr.mxu0 0.0
        %574 = vmatpush1.msra.mxu0 0.0
        %575 = vmatprep.subr.mxu0 0.0
        %576 = vmatpush1.msra.mxu0 0.0
        %577 = vmatprep.subr.mxu0 0.0
        %578 = vmatpush1.msra.mxu0 0.0
        %579 = vmatprep.subr.mxu0 0.0
        %580 = vmatpush1.msra.mxu0 0.0
        %581 = vmatprep.subr.mxu0 0.0
        %582 = vmatpush1.msra.mxu0 0.0
        %583 = vmatprep.subr.mxu0 0.0
        %584 = vmatpush1.msra.mxu0 0.0
        %585 = vmatprep.subr.mxu0 0.0
        %586 = vmatpush1.msra.mxu0 0.0
        %587 = vmatprep.subr.mxu0 0.0
        %588 = vmatpush1.msra.mxu0 0.0
        %589 = vmatprep.subr.mxu0 0.0
        %590 = vmatpush1.msra.mxu0 0.0
        %591 = vmatprep.subr.mxu0 0.0
        %592 = vmatpush1.msra.mxu0 0.0
        %593 = vmatprep.subr.mxu0 0.0
        %594 = vmatpush1.msra.mxu0 0.0
        %595 = vmatprep.subr.mxu0 0.0
        %596 = vmatpush1.msra.mxu0 0.0
        %597 = vmatprep.subr.mxu0 0.0
        %598 = vmatpush1.msra.mxu0 0.0
        %599 = vmatprep.subr.mxu0 0.0
        %600 = vmatpush1.msra.mxu0 0.0
        %601 = vmatprep.subr.mxu0 0.0
        %602 = vmatpush1.msra.mxu0 0.0
        %603 = vmatprep.subr.mxu0 0.0
        %604 = vmatpush1.msra.mxu0 0.0
        %605 = vmatprep.subr.mxu0 0.0
        %606 = vmatpush1.msra.mxu0 0.0
        %607 = vmatprep.subr.mxu0 0.0
        %608 = vmatpush1.msra.mxu0 0.0
        %609 = vmatprep.mubr.f32.mxu0 0.0
        %610 = vmatmul.mubr.f32.gmra.mrb[0].mxu0 %v543
        %v611 = vpop.f32.mrb[0].mxu0
        %v612 = vadd.f32 %v540, %v611
        %v613 = vpop.f32.mrb[0].mxu0
        %614 = vdwg.mxu0
        %v615 = vld [vmem:[%s395] sm:$0xff]
        %vm616 = vcmask 64512
        %v618 = vsel %vm616, %v530, 0
        %v621 = vsel %vm616, %v612, 0
        %623 = vmatprep.subr.mxu0 0.0
        %624 = vmatpush1.xpose.msra.mxu0 %v621
        %625 = vmatprep.subr.mxu0 0.0
        %626 = vmatpush1.xpose.msra.mxu0 0.0
        %627 = vmatprep.subr.mxu0 0.0
        %628 = vmatpush1.xpose.msra.mxu0 0.0
        %629 = vmatprep.subr.mxu0 0.0
        %630 = vmatpush1.xpose.msra.mxu0 0.0
        %631 = vmatprep.subr.mxu0 0.0
        %632 = vmatpush1.xpose.msra.mxu0 0.0
        %633 = vmatprep.subr.mxu0 0.0
        %634 = vmatpush1.xpose.msra.mxu0 0.0
        %635 = vmatprep.subr.mxu0 0.0
        %636 = vmatpush1.xpose.msra.mxu0 0.0
        %637 = vmatprep.subr.mxu0 0.0
        %638 = vmatpush1.xpose.msra.mxu0 0.0
        %639 = vmatprep.subr.mxu0 0.0
        %640 = vmatpush1.xpose.msra.mxu0 0.0
        %641 = vmatprep.subr.mxu0 0.0
        %642 = vmatpush1.xpose.msra.mxu0 0.0
        %643 = vmatprep.subr.mxu0 0.0
        %644 = vmatpush1.xpose.msra.mxu0 0.0
        %645 = vmatprep.subr.mxu0 0.0
        %646 = vmatpush1.xpose.msra.mxu0 0.0
        %647 = vmatprep.subr.mxu0 0.0
        %648 = vmatpush1.xpose.msra.mxu0 0.0
        %649 = vmatprep.subr.mxu0 0.0
        %650 = vmatpush1.xpose.msra.mxu0 0.0
        %651 = vmatprep.subr.mxu0 0.0
        %652 = vmatpush1.xpose.msra.mxu0 0.0
        %653 = vmatprep.subr.mxu0 0.0
        %654 = vmatpush1.xpose.msra.mxu0 0.0
        %655 = vmatprep.subr.mxu0 0.0
        %656 = vmatpush1.xpose.msra.mxu0 0.0
        %657 = vmatprep.subr.mxu0 0.0
        %658 = vmatpush1.xpose.msra.mxu0 0.0
        %659 = vmatprep.subr.mxu0 0.0
        %660 = vmatpush1.xpose.msra.mxu0 0.0
        %661 = vmatprep.subr.mxu0 0.0
        %662 = vmatpush1.xpose.msra.mxu0 0.0
        %663 = vmatprep.subr.mxu0 0.0
        %664 = vmatpush1.xpose.msra.mxu0 0.0
        %665 = vmatprep.subr.mxu0 0.0
        %666 = vmatpush1.xpose.msra.mxu0 0.0
        %667 = vmatprep.subr.mxu0 0.0
        %668 = vmatpush1.xpose.msra.mxu0 0.0
        %669 = vmatprep.subr.mxu0 0.0
        %670 = vmatpush1.xpose.msra.mxu0 0.0
        %671 = vmatprep.subr.mxu0 0.0
        %672 = vmatpush1.xpose.msra.mxu0 0.0
        %673 = vmatprep.subr.mxu0 0.0
        %674 = vmatpush1.xpose.msra.mxu0 0.0
        %675 = vmatprep.subr.mxu0 0.0
        %676 = vmatpush1.xpose.msra.mxu0 0.0
        %677 = vmatprep.subr.mxu0 0.0
        %678 = vmatpush1.xpose.msra.mxu0 0.0
        %679 = vmatprep.subr.mxu0 0.0
        %680 = vmatpush1.xpose.msra.mxu0 0.0
        %681 = vmatprep.subr.mxu0 0.0
        %682 = vmatpush1.xpose.msra.mxu0 0.0
        %683 = vmatprep.subr.mxu0 0.0
        %684 = vmatpush1.xpose.msra.mxu0 0.0
        %685 = vmatprep.subr.mxu0 0.0
        %686 = vmatpush1.xpose.msra.mxu0 0.0
        %687 = vmatprep.mubr.f32.mxu0 0.0
        %688 = vmatmul.mubr.f32.gmra.mrb[0].mxu0 %v618
        %v689 = vpop.f32.mrb[0].mxu0
        %v690 = vadd.f32 %v615, %v689
        %v691 = vpop.f32.mrb[0].mxu0
        %692 = vdwg.mxu0
        %v693 = vsel %vm616, %v690, -inf
        %694 = vmax.xlane.f32.xlu0 %v693
        %v695 = vpop.xlane.xlu0 %694
        %v696 = vsub.f32 %v690, %v695
        %v697 = vmul.f32 %v696, 1.442695
        %v698 = vpow.pop %v697
        %v699 = vsel %vm616, %v698, 0.0
        %700 = vadd.xlane.f32.xlu0 %v699
        %v701 = vpop.xlane.xlu0 %700
        %702 = vrot.lane.b32.xlu0 %v612, 96
        %v703 = vpop.permute.xlu0 %702
        %v706 = vsel %vm616, %v698, 0
        %708 = vmatprep.subr.mxu0 0.0
        %709 = vmatpush1.msra.mxu0 %v703
        %710 = vmatprep.subr.mxu0 0.0
        %711 = vmatpush1.msra.mxu0 0.0
        %712 = vmatprep.subr.mxu0 0.0
        %713 = vmatpush1.msra.mxu0 0.0
        %714 = vmatprep.subr.mxu0 0.0
        %715 = vmatpush1.msra.mxu0 0.0
        %716 = vmatprep.subr.mxu0 0.0
        %717 = vmatpush1.msra.mxu0 0.0
        %718 = vmatprep.subr.mxu0 0.0
        %719 = vmatpush1.msra.mxu0 0.0
        %720 = vmatprep.subr.mxu0 0.0
        %721 = vmatpush1.msra.mxu0 0.0
        %722 = vmatprep.subr.mxu0 0.0
        %723 = vmatpush1.msra.mxu0 0.0
        %724 = vmatprep.subr.mxu0 0.0
        %725 = vmatpush1.msra.mxu0 0.0
        %726 = vmatprep.subr.mxu0 0.0
        %727 = vmatpush1.msra.mxu0 0.0
        %728 = vmatprep.subr.mxu0 0.0
        %729 = vmatpush1.msra.mxu0 0.0
        %730 = vmatprep.subr.mxu0 0.0
        %731 = vmatpush1.msra.mxu0 0.0
        %732 = vmatprep.subr.mxu0 0.0
        %733 = vmatpush1.msra.mxu0 0.0
        %734 = vmatprep.subr.mxu0 0.0
        %735 = vmatpush1.msra.mxu0 0.0
        %736 = vmatprep.subr.mxu0 0.0
        %737 = vmatpush1.msra.mxu0 0.0
        %738 = vmatprep.subr.mxu0 0.0
        %739 = vmatpush1.msra.mxu0 0.0
        %740 = vmatprep.subr.mxu0 0.0
        %741 = vmatpush1.msra.mxu0 0.0
        %742 = vmatprep.subr.mxu0 0.0
        %743 = vmatpush1.msra.mxu0 0.0
        %744 = vmatprep.subr.mxu0 0.0
        %745 = vmatpush1.msra.mxu0 0.0
        %746 = vmatprep.subr.mxu0 0.0
        %747 = vmatpush1.msra.mxu0 0.0
        %748 = vmatprep.subr.mxu0 0.0
        %749 = vmatpush1.msra.mxu0 0.0
        %750 = vmatprep.subr.mxu0 0.0
        %751 = vmatpush1.msra.mxu0 0.0
        %752 = vmatprep.subr.mxu0 0.0
        %753 = vmatpush1.msra.mxu0 0.0
        %754 = vmatprep.subr.mxu0 0.0
        %755 = vmatpush1.msra.mxu0 0.0
        %756 = vmatprep.subr.mxu0 0.0
        %757 = vmatpush1.msra.mxu0 0.0
        %758 = vmatprep.subr.mxu0 0.0
        %759 = vmatpush1.msra.mxu0 0.0
        %760 = vmatprep.subr.mxu0 0.0
        %761 = vmatpush1.msra.mxu0 0.0
        %762 = vmatprep.subr.mxu0 0.0
        %763 = vmatpush1.msra.mxu0 0.0
        %764 = vmatprep.subr.mxu0 0.0
        %765 = vmatpush1.msra.mxu0 0.0
        %766 = vmatprep.subr.mxu0 0.0
        %767 = vmatpush1.msra.mxu0 0.0
        %768 = vmatprep.subr.mxu0 0.0
        %769 = vmatpush1.msra.mxu0 0.0
        %770 = vmatprep.subr.mxu0 0.0
        %771 = vmatpush1.msra.mxu0 0.0
        %772 = vmatprep.mubr.f32.mxu0 0.0
        %773 = vmatmul.mubr.f32.gmra.mrb[0].mxu0 %v706
        %v774 = vpop.f32.mrb[0].mxu0
        %v775 = vadd.f32 0.0, %v774
        %v776 = vpop.f32.mrb[0].mxu0
        %777 = vdwg.mxu0
        %v778 = vrcp.pop %v701
        %v779 = vmul.f32 %v775, %v778
        %v780 = vadd.f32 %v530, %v779
        %781 = vst.msk [vmem:[#allocation2] sm:$0xff] %vm616, %v780
        %782 = vrot.lane.b32.xlu0 %v530, 120
        %v783 = vpop.permute.xlu0 %782
        %784 = vrot.lane.b32.xlu0 %v612, 120
        %v785 = vpop.permute.xlu0 %784
        %v786 = vsel %vm616, %v783, 0
        %v788 = vsel %vm616, %v785, 0
        %790 = vmatprep.subr.mxu0 0.0
        %791 = vmatpush1.xpose.msra.mxu0 %v788
        %792 = vmatprep.subr.mxu0 0.0
        %793 = vmatpush1.xpose.msra.mxu0 0.0
        %794 = vmatprep.subr.mxu0 0.0
        %795 = vmatpush1.xpose.msra.mxu0 0.0
        %796 = vmatprep.subr.mxu0 0.0
        %797 = vmatpush1.xpose.msra.mxu0 0.0
        %798 = vmatprep.subr.mxu0 0.0
        %799 = vmatpush1.xpose.msra.mxu0 0.0
        %800 = vmatprep.subr.mxu0 0.0
        %801 = vmatpush1.xpose.msra.mxu0 0.0
        %802 = vmatprep.subr.mxu0 0.0
        %803 = vmatpush1.xpose.msra.mxu0 0.0
        %804 = vmatprep.subr.mxu0 0.0
        %805 = vmatpush1.xpose.msra.mxu0 0.0
        %806 = vmatprep.subr.mxu0 0.0
        %807 = vmatpush1.xpose.msra.mxu0 0.0
        %808 = vmatprep.subr.mxu0 0.0
        %809 = vmatpush1.xpose.msra.mxu0 0.0
        %810 = vmatprep.subr.mxu0 0.0
        %811 = vmatpush1.xpose.msra.mxu0 0.0
        %812 = vmatprep.subr.mxu0 0.0
        %813 = vmatpush1.xpose.msra.mxu0 0.0
        %814 = vmatprep.subr.mxu0 0.0
        %815 = vmatpush1.xpose.msra.mxu0 0.0
        %816 = vmatprep.subr.mxu0 0.0
        %817 = vmatpush1.xpose.msra.mxu0 0.0
        %818 = vmatprep.subr.mxu0 0.0
        %819 = vmatpush1.xpose.msra.mxu0 0.0
        %820 = vmatprep.subr.mxu0 0.0
        %821 = vmatpush1.xpose.msra.mxu0 0.0
        %822 = vmatprep.subr.mxu0 0.0
        %823 = vmatpush1.xpose.msra.mxu0 0.0
        %824 = vmatprep.subr.mxu0 0.0
        %825 = vmatpush1.xpose.msra.mxu0 0.0
        %826 = vmatprep.subr.mxu0 0.0
        %827 = vmatpush1.xpose.msra.mxu0 0.0
        %828 = vmatprep.subr.mxu0 0.0
        %829 = vmatpush1.xpose.msra.mxu0 0.0
        %830 = vmatprep.subr.mxu0 0.0
        %831 = vmatpush1.xpose.msra.mxu0 0.0
        %832 = vmatprep.subr.mxu0 0.0
        %833 = vmatpush1.xpose.msra.mxu0 0.0
        %834 = vmatprep.subr.mxu0 0.0
        %835 = vmatpush1.xpose.msra.mxu0 0.0
        %836 = vmatprep.subr.mxu0 0.0
        %837 = vmatpush1.xpose.msra.mxu0 0.0
        %838 = vmatprep.subr.mxu0 0.0
        %839 = vmatpush1.xpose.msra.mxu0 0.0
        %840 = vmatprep.subr.mxu0 0.0
        %841 = vmatpush1.xpose.msra.mxu0 0.0
        %842 = vmatprep.subr.mxu0 0.0
        %843 = vmatpush1.xpose.msra.mxu0 0.0
        %844 = vmatprep.subr.mxu0 0.0
        %845 = vmatpush1.xpose.msra.mxu0 0.0
        %846 = vmatprep.subr.mxu0 0.0
        %847 = vmatpush1.xpose.msra.mxu0 0.0
        %848 = vmatprep.subr.mxu0 0.0
        %849 = vmatpush1.xpose.msra.mxu0 0.0
        %850 = vmatprep.subr.mxu0 0.0
        %851 = vmatpush1.xpose.msra.mxu0 0.0
        %852 = vmatprep.subr.mxu0 0.0
        %853 = vmatpush1.xpose.msra.mxu0 0.0
        %854 = vmatprep.mubr.f32.mxu0 0.0
        %855 = vmatmul.mubr.f32.gmra.mrb[0].mxu0 %v786
        %v856 = vpop.f32.mrb[0].mxu0
        %v857 = vadd.f32 %v615, %v856
        %v858 = vpop.f32.mrb[0].mxu0
        %859 = vdwg.mxu0
        %v860 = vsel %vm616, %v857, -inf
        %861 = vmax.xlane.f32.xlu0 %v860
        %v862 = vpop.xlane.xlu0 %861
        %v863 = vsub.f32 %v857, %v862
        %v864 = vmul.f32 %v863, 1.442695
        %v865 = vpow.pop %v864
        %v866 = vsel %vm616, %v865, 0.0
        %867 = vadd.xlane.f32.xlu0 %v866
        %v868 = vpop.xlane.xlu0 %867
        %869 = vrot.lane.b32.xlu0 %v612, 88
        %v870 = vpop.permute.xlu0 %869
        %v873 = vsel %vm616, %v865, 0
        %875 = vmatprep.subr.mxu0 0.0
        %876 = vmatpush1.msra.mxu0 %v870
        %877 = vmatprep.subr.mxu0 0.0
        %878 = vmatpush1.msra.mxu0 0.0
        %879 = vmatprep.subr.mxu0 0.0
        %880 = vmatpush1.msra.mxu0 0.0
        %881 = vmatprep.subr.mxu0 0.0
        %882 = vmatpush1.msra.mxu0 0.0
        %883 = vmatprep.subr.mxu0 0.0
        %884 = vmatpush1.msra.mxu0 0.0
        %885 = vmatprep.subr.mxu0 0.0
        %886 = vmatpush1.msra.mxu0 0.0
        %887 = vmatprep.subr.mxu0 0.0
        %888 = vmatpush1.msra.mxu0 0.0
        %889 = vmatprep.subr.mxu0 0.0
        %890 = vmatpush1.msra.mxu0 0.0
        %891 = vmatprep.subr.mxu0 0.0
        %892 = vmatpush1.msra.mxu0 0.0
        %893 = vmatprep.subr.mxu0 0.0
        %894 = vmatpush1.msra.mxu0 0.0
        %895 = vmatprep.subr.mxu0 0.0
        %896 = vmatpush1.msra.mxu0 0.0
        %897 = vmatprep.subr.mxu0 0.0
        %898 = vmatpush1.msra.mxu0 0.0
        %899 = vmatprep.subr.mxu0 0.0
        %900 = vmatpush1.msra.mxu0 0.0
        %901 = vmatprep.subr.mxu0 0.0
        %902 = vmatpush1.msra.mxu0 0.0
        %903 = vmatprep.subr.mxu0 0.0
        %904 = vmatpush1.msra.mxu0 0.0
        %905 = vmatprep.subr.mxu0 0.0
        %906 = vmatpush1.msra.mxu0 0.0
        %907 = vmatprep.subr.mxu0 0.0
        %908 = vmatpush1.msra.mxu0 0.0
        %909 = vmatprep.subr.mxu0 0.0
        %910 = vmatpush1.msra.mxu0 0.0
        %911 = vmatprep.subr.mxu0 0.0
        %912 = vmatpush1.msra.mxu0 0.0
        %913 = vmatprep.subr.mxu0 0.0
        %914 = vmatpush1.msra.mxu0 0.0
        %915 = vmatprep.subr.mxu0 0.0
        %916 = vmatpush1.msra.mxu0 0.0
        %917 = vmatprep.subr.mxu0 0.0
        %918 = vmatpush1.msra.mxu0 0.0
        %919 = vmatprep.subr.mxu0 0.0
        %920 = vmatpush1.msra.mxu0 0.0
        %921 = vmatprep.subr.mxu0 0.0
        %922 = vmatpush1.msra.mxu0 0.0
        %923 = vmatprep.subr.mxu0 0.0
        %924 = vmatpush1.msra.mxu0 0.0
        %925 = vmatprep.subr.mxu0 0.0
        %926 = vmatpush1.msra.mxu0 0.0
        %927 = vmatprep.subr.mxu0 0.0
        %928 = vmatpush1.msra.mxu0 0.0
        %929 = vmatprep.subr.mxu0 0.0
        %930 = vmatpush1.msra.mxu0 0.0
        %931 = vmatprep.subr.mxu0 0.0
        %932 = vmatpush1.msra.mxu0 0.0
        %933 = vmatprep.subr.mxu0 0.0
        %934 = vmatpush1.msra.mxu0 0.0
        %935 = vmatprep.subr.mxu0 0.0
        %936 = vmatpush1.msra.mxu0 0.0
        %937 = vmatprep.subr.mxu0 0.0
        %938 = vmatpush1.msra.mxu0 0.0
        %939 = vmatprep.mubr.f32.mxu0 0.0
        %940 = vmatmul.mubr.f32.gmra.mrb[0].mxu0 %v873
        %v941 = vpop.f32.mrb[0].mxu0
        %v942 = vadd.f32 0.0, %v941
        %v943 = vpop.f32.mrb[0].mxu0
        %944 = vdwg.mxu0
        %v945 = vrcp.pop %v868
        %v946 = vmul.f32 %v942, %v945
        %948 = vrot.lane.b32.xlu0 %v946, 8
        %v949 = vpop.permute.xlu0 %948
        %v951 = vadd.f32 %v530, %v949
        %vm952 = vcmask 130112
        %953 = vst.msk [vmem:[#allocation2] sm:$0xff] %vm952, %v951
        %954 = vrot.lane.b32.xlu0 %v530, 112
        %v955 = vpop.permute.xlu0 %954
        %956 = vrot.lane.b32.xlu0 %v612, 112
        %v957 = vpop.permute.xlu0 %956
        %v958 = vsel %vm616, %v955, 0
        %v960 = vsel %vm616, %v957, 0
        %962 = vmatprep.subr.mxu0 0.0
        %963 = vmatpush1.xpose.msra.mxu0 %v960
        %964 = vmatprep.subr.mxu0 0.0
        %965 = vmatpush1.xpose.msra.mxu0 0.0
        %966 = vmatprep.subr.mxu0 0.0
        %967 = vmatpush1.xpose.msra.mxu0 0.0
        %968 = vmatprep.subr.mxu0 0.0
        %969 = vmatpush1.xpose.msra.mxu0 0.0
        %970 = vmatprep.subr.mxu0 0.0
        %971 = vmatpush1.xpose.msra.mxu0 0.0
        %972 = vmatprep.subr.mxu0 0.0
        %973 = vmatpush1.xpose.msra.mxu0 0.0
        %974 = vmatprep.subr.mxu0 0.0
        %975 = vmatpush1.xpose.msra.mxu0 0.0
        %976 = vmatprep.subr.mxu0 0.0
        %977 = vmatpush1.xpose.msra.mxu0 0.0
        %978 = vmatprep.subr.mxu0 0.0
        %979 = vmatpush1.xpose.msra.mxu0 0.0
        %980 = vmatprep.subr.mxu0 0.0
        %981 = vmatpush1.xpose.msra.mxu0 0.0
        %982 = vmatprep.subr.mxu0 0.0
        %983 = vmatpush1.xpose.msra.mxu0 0.0
        %984 = vmatprep.subr.mxu0 0.0
        %985 = vmatpush1.xpose.msra.mxu0 0.0
        %986 = vmatprep.subr.mxu0 0.0
        %987 = vmatpush1.xpose.msra.mxu0 0.0
        %988 = vmatprep.subr.mxu0 0.0
        %989 = vmatpush1.xpose.msra.mxu0 0.0
        %990 = vmatprep.subr.mxu0 0.0
        %991 = vmatpush1.xpose.msra.mxu0 0.0
        %992 = vmatprep.subr.mxu0 0.0
        %993 = vmatpush1.xpose.msra.mxu0 0.0
        %994 = vmatprep.subr.mxu0 0.0
        %995 = vmatpush1.xpose.msra.mxu0 0.0
        %996 = vmatprep.subr.mxu0 0.0
        %997 = vmatpush1.xpose.msra.mxu0 0.0
        %998 = vmatprep.subr.mxu0 0.0
        %999 = vmatpush1.xpose.msra.mxu0 0.0
        %1000 = vmatprep.subr.mxu0 0.0
        %1001 = vmatpush1.xpose.msra.mxu0 0.0
        %1002 = vmatprep.subr.mxu0 0.0
        %1003 = vmatpush1.xpose.msra.mxu0 0.0
        %1004 = vmatprep.subr.mxu0 0.0
        %1005 = vmatpush1.xpose.msra.mxu0 0.0
        %1006 = vmatprep.subr.mxu0 0.0
        %1007 = vmatpush1.xpose.msra.mxu0 0.0
        %1008 = vmatprep.subr.mxu0 0.0
        %1009 = vmatpush1.xpose.msra.mxu0 0.0
        %1010 = vmatprep.subr.mxu0 0.0
        %1011 = vmatpush1.xpose.msra.mxu0 0.0
        %1012 = vmatprep.subr.mxu0 0.0
        %1013 = vmatpush1.xpose.msra.mxu0 0.0
        %1014 = vmatprep.subr.mxu0 0.0
        %1015 = vmatpush1.xpose.msra.mxu0 0.0
        %1016 = vmatprep.subr.mxu0 0.0
        %1017 = vmatpush1.xpose.msra.mxu0 0.0
        %1018 = vmatprep.subr.mxu0 0.0
        %1019 = vmatpush1.xpose.msra.mxu0 0.0
        %1020 = vmatprep.subr.mxu0 0.0
        %1021 = vmatpush1.xpose.msra.mxu0 0.0
        %1022 = vmatprep.subr.mxu0 0.0
        %1023 = vmatpush1.xpose.msra.mxu0 0.0
        %1024 = vmatprep.subr.mxu0 0.0
        %1025 = vmatpush1.xpose.msra.mxu0 0.0
        %1026 = vmatprep.mubr.f32.mxu0 0.0
        %1027 = vmatmul.mubr.f32.gmra.mrb[0].mxu0 %v958
        %v1028 = vpop.f32.mrb[0].mxu0
        %v1029 = vadd.f32 %v615, %v1028
        %v1030 = vpop.f32.mrb[0].mxu0
        %1031 = vdwg.mxu0
        %v1032 = vsel %vm616, %v1029, -inf
        %1033 = vmax.xlane.f32.xlu0 %v1032
        %v1034 = vpop.xlane.xlu0 %1033
        %v1035 = vsub.f32 %v1029, %v1034
        %v1036 = vmul.f32 %v1035, 1.442695
        %v1037 = vpow.pop %v1036
        %v1038 = vsel %vm616, %v1037, 0.0
        %1039 = vadd.xlane.f32.xlu0 %v1038
        %v1040 = vpop.xlane.xlu0 %1039
        %1041 = vrot.lane.b32.xlu0 %v612, 80
        %v1042 = vpop.permute.xlu0 %1041
        %v1045 = vsel %vm616, %v1037, 0
        %1047 = vmatprep.subr.mxu0 0.0
        %1048 = vmatpush1.msra.mxu0 %v1042
        %1049 = vmatprep.subr.mxu0 0.0
        %1050 = vmatpush1.msra.mxu0 0.0
        %1051 = vmatprep.subr.mxu0 0.0
        %1052 = vmatpush1.msra.mxu0 0.0
        %1053 = vmatprep.subr.mxu0 0.0
        %1054 = vmatpush1.msra.mxu0 0.0
        %1055 = vmatprep.subr.mxu0 0.0
        %1056 = vmatpush1.msra.mxu0 0.0
        %1057 = vmatprep.subr.mxu0 0.0
        %1058 = vmatpush1.msra.mxu0 0.0
        %1059 = vmatprep.subr.mxu0 0.0
        %1060 = vmatpush1.msra.mxu0 0.0
        %1061 = vmatprep.subr.mxu0 0.0
        %1062 = vmatpush1.msra.mxu0 0.0
        %1063 = vmatprep.subr.mxu0 0.0
        %1064 = vmatpush1.msra.mxu0 0.0
        %1065 = vmatprep.subr.mxu0 0.0
        %1066 = vmatpush1.msra.mxu0 0.0
        %1067 = vmatprep.subr.mxu0 0.0
        %1068 = vmatpush1.msra.mxu0 0.0
        %1069 = vmatprep.subr.mxu0 0.0
        %1070 = vmatpush1.msra.mxu0 0.0
        %1071 = vmatprep.subr.mxu0 0.0
        %1072 = vmatpush1.msra.mxu0 0.0
        %1073 = vmatprep.subr.mxu0 0.0
        %1074 = vmatpush1.msra.mxu0 0.0
        %1075 = vmatprep.subr.mxu0 0.0
        %1076 = vmatpush1.msra.mxu0 0.0
        %1077 = vmatprep.subr.mxu0 0.0
        %1078 = vmatpush1.msra.mxu0 0.0
        %1079 = vmatprep.subr.mxu0 0.0
        %1080 = vmatpush1.msra.mxu0 0.0
        %1081 = vmatprep.subr.mxu0 0.0
        %1082 = vmatpush1.msra.mxu0 0.0
        %1083 = vmatprep.subr.mxu0 0.0
        %1084 = vmatpush1.msra.mxu0 0.0
        %1085 = vmatprep.subr.mxu0 0.0
        %1086 = vmatpush1.msra.mxu0 0.0
        %1087 = vmatprep.subr.mxu0 0.0
        %1088 = vmatpush1.msra.mxu0 0.0
        %1089 = vmatprep.subr.mxu0 0.0
        %1090 = vmatpush1.msra.mxu0 0.0
        %1091 = vmatprep.subr.mxu0 0.0
        %1092 = vmatpush1.msra.mxu0 0.0
        %1093 = vmatprep.subr.mxu0 0.0
        %1094 = vmatpush1.msra.mxu0 0.0
        %1095 = vmatprep.subr.mxu0 0.0
        %1096 = vmatpush1.msra.mxu0 0.0
        %1097 = vmatprep.subr.mxu0 0.0
        %1098 = vmatpush1.msra.mxu0 0.0
        %1099 = vmatprep.subr.mxu0 0.0
        %1100 = vmatpush1.msra.mxu0 0.0
        %1101 = vmatprep.subr.mxu0 0.0
        %1102 = vmatpush1.msra.mxu0 0.0
        %1103 = vmatprep.subr.mxu0 0.0
        %1104 = vmatpush1.msra.mxu0 0.0
        %1105 = vmatprep.subr.mxu0 0.0
        %1106 = vmatpush1.msra.mxu0 0.0
        %1107 = vmatprep.subr.mxu0 0.0
        %1108 = vmatpush1.msra.mxu0 0.0
        %1109 = vmatprep.subr.mxu0 0.0
        %1110 = vmatpush1.msra.mxu0 0.0
        %1111 = vmatprep.mubr.f32.mxu0 0.0
        %1112 = vmatmul.mubr.f32.gmra.mrb[0].mxu0 %v1045
        %v1113 = vpop.f32.mrb[0].mxu0
        %v1114 = vadd.f32 0.0, %v1113
        %v1115 = vpop.f32.mrb[0].mxu0
        %1116 = vdwg.mxu0
        %v1117 = vrcp.pop %v1040
        %v1118 = vmul.f32 %v1114, %v1117
        %1120 = vrot.lane.b32.xlu0 %v1118, 16
        %v1121 = vpop.permute.xlu0 %1120
        %v1123 = vadd.f32 %v530, %v1121
        %vm1124 = vcmask 195712
        %1125 = vst.msk [vmem:[#allocation2] sm:$0xff] %vm1124, %v1123
        %1126 = vrot.lane.b32.xlu0 %v530, 104
        %v1127 = vpop.permute.xlu0 %1126
        %1128 = vrot.lane.b32.xlu0 %v612, 104
        %v1129 = vpop.permute.xlu0 %1128
        %v1130 = vsel %vm616, %v1127, 0
        %v1132 = vsel %vm616, %v1129, 0
        %1134 = vmatprep.subr.mxu0 0.0
        %1135 = vmatpush1.xpose.msra.mxu0 %v1132
        %1136 = vmatprep.subr.mxu0 0.0
        %1137 = vmatpush1.xpose.msra.mxu0 0.0
        %1138 = vmatprep.subr.mxu0 0.0
        %1139 = vmatpush1.xpose.msra.mxu0 0.0
        %1140 = vmatprep.subr.mxu0 0.0
        %1141 = vmatpush1.xpose.msra.mxu0 0.0
        %1142 = vmatprep.subr.mxu0 0.0
        %1143 = vmatpush1.xpose.msra.mxu0 0.0
        %1144 = vmatprep.subr.mxu0 0.0
        %1145 = vmatpush1.xpose.msra.mxu0 0.0
        %1146 = vmatprep.subr.mxu0 0.0
        %1147 = vmatpush1.xpose.msra.mxu0 0.0
        %1148 = vmatprep.subr.mxu0 0.0
        %1149 = vmatpush1.xpose.msra.mxu0 0.0
        %1150 = vmatprep.subr.mxu0 0.0
        %1151 = vmatpush1.xpose.msra.mxu0 0.0
        %1152 = vmatprep.subr.mxu0 0.0
        %1153 = vmatpush1.xpose.msra.mxu0 0.0
        %1154 = vmatprep.subr.mxu0 0.0
        %1155 = vmatpush1.xpose.msra.mxu0 0.0
        %1156 = vmatprep.subr.mxu0 0.0
        %1157 = vmatpush1.xpose.msra.mxu0 0.0
        %1158 = vmatprep.subr.mxu0 0.0
        %1159 = vmatpush1.xpose.msra.mxu0 0.0
        %1160 = vmatprep.subr.mxu0 0.0
        %1161 = vmatpush1.xpose.msra.mxu0 0.0
        %1162 = vmatprep.subr.mxu0 0.0
        %1163 = vmatpush1.xpose.msra.mxu0 0.0
        %1164 = vmatprep.subr.mxu0 0.0
        %1165 = vmatpush1.xpose.msra.mxu0 0.0
        %1166 = vmatprep.subr.mxu0 0.0
        %1167 = vmatpush1.xpose.msra.mxu0 0.0
        %1168 = vmatprep.subr.mxu0 0.0
        %1169 = vmatpush1.xpose.msra.mxu0 0.0
        %1170 = vmatprep.subr.mxu0 0.0
        %1171 = vmatpush1.xpose.msra.mxu0 0.0
        %1172 = vmatprep.subr.mxu0 0.0
        %1173 = vmatpush1.xpose.msra.mxu0 0.0
        %1174 = vmatprep.subr.mxu0 0.0
        %1175 = vmatpush1.xpose.msra.mxu0 0.0
        %1176 = vmatprep.subr.mxu0 0.0
        %1177 = vmatpush1.xpose.msra.mxu0 0.0
        %1178 = vmatprep.subr.mxu0 0.0
        %1179 = vmatpush1.xpose.msra.mxu0 0.0
        %1180 = vmatprep.subr.mxu0 0.0
        %1181 = vmatpush1.xpose.msra.mxu0 0.0
        %1182 = vmatprep.subr.mxu0 0.0
        %1183 = vmatpush1.xpose.msra.mxu0 0.0
        %1184 = vmatprep.subr.mxu0 0.0
        %1185 = vmatpush1.xpose.msra.mxu0 0.0
        %1186 = vmatprep.subr.mxu0 0.0
        %1187 = vmatpush1.xpose.msra.mxu0 0.0
        %1188 = vmatprep.subr.mxu0 0.0
        %1189 = vmatpush1.xpose.msra.mxu0 0.0
        %1190 = vmatprep.subr.mxu0 0.0
        %1191 = vmatpush1.xpose.msra.mxu0 0.0
        %1192 = vmatprep.subr.mxu0 0.0
        %1193 = vmatpush1.xpose.msra.mxu0 0.0
        %1194 = vmatprep.subr.mxu0 0.0
        %1195 = vmatpush1.xpose.msra.mxu0 0.0
        %1196 = vmatprep.subr.mxu0 0.0
        %1197 = vmatpush1.xpose.msra.mxu0 0.0
        %1198 = vmatprep.mubr.f32.mxu0 0.0
        %1199 = vmatmul.mubr.f32.gmra.mrb[0].mxu0 %v1130
        %v1200 = vpop.f32.mrb[0].mxu0
        %v1201 = vadd.f32 %v615, %v1200
        %v1202 = vpop.f32.mrb[0].mxu0
        %1203 = vdwg.mxu0
        %v1204 = vsel %vm616, %v1201, -inf
        %1205 = vmax.xlane.f32.xlu0 %v1204
        %v1206 = vpop.xlane.xlu0 %1205
        %v1207 = vsub.f32 %v1201, %v1206
        %v1208 = vmul.f32 %v1207, 1.442695
        %v1209 = vpow.pop %v1208
        %v1210 = vsel %vm616, %v1209, 0.0
        %1211 = vadd.xlane.f32.xlu0 %v1210
        %v1212 = vpop.xlane.xlu0 %1211
        %1213 = vrot.lane.b32.xlu0 %v612, 72
        %v1214 = vpop.permute.xlu0 %1213
        %v1217 = vsel %vm616, %v1209, 0
        %1219 = vmatprep.subr.mxu0 0.0
        %1220 = vmatpush1.msra.mxu0 %v1214
        %1221 = vmatprep.subr.mxu0 0.0
        %1222 = vmatpush1.msra.mxu0 0.0
        %1223 = vmatprep.subr.mxu0 0.0
        %1224 = vmatpush1.msra.mxu0 0.0
        %1225 = vmatprep.subr.mxu0 0.0
        %1226 = vmatpush1.msra.mxu0 0.0
        %1227 = vmatprep.subr.mxu0 0.0
        %1228 = vmatpush1.msra.mxu0 0.0
        %1229 = vmatprep.subr.mxu0 0.0
        %1230 = vmatpush1.msra.mxu0 0.0
        %1231 = vmatprep.subr.mxu0 0.0
        %1232 = vmatpush1.msra.mxu0 0.0
        %1233 = vmatprep.subr.mxu0 0.0
        %1234 = vmatpush1.msra.mxu0 0.0
        %1235 = vmatprep.subr.mxu0 0.0
        %1236 = vmatpush1.msra.mxu0 0.0
        %1237 = vmatprep.subr.mxu0 0.0
        %1238 = vmatpush1.msra.mxu0 0.0
        %1239 = vmatprep.subr.mxu0 0.0
        %1240 = vmatpush1.msra.mxu0 0.0
        %1241 = vmatprep.subr.mxu0 0.0
        %1242 = vmatpush1.msra.mxu0 0.0
        %1243 = vmatprep.subr.mxu0 0.0
        %1244 = vmatpush1.msra.mxu0 0.0
        %1245 = vmatprep.subr.mxu0 0.0
        %1246 = vmatpush1.msra.mxu0 0.0
        %1247 = vmatprep.subr.mxu0 0.0
        %1248 = vmatpush1.msra.mxu0 0.0
        %1249 = vmatprep.subr.mxu0 0.0
        %1250 = vmatpush1.msra.mxu0 0.0
        %1251 = vmatprep.subr.mxu0 0.0
        %1252 = vmatpush1.msra.mxu0 0.0
        %1253 = vmatprep.subr.mxu0 0.0
        %1254 = vmatpush1.msra.mxu0 0.0
        %1255 = vmatprep.subr.mxu0 0.0
        %1256 = vmatpush1.msra.mxu0 0.0
        %1257 = vmatprep.subr.mxu0 0.0
        %1258 = vmatpush1.msra.mxu0 0.0
        %1259 = vmatprep.subr.mxu0 0.0
        %1260 = vmatpush1.msra.mxu0 0.0
        %1261 = vmatprep.subr.mxu0 0.0
        %1262 = vmatpush1.msra.mxu0 0.0
        %1263 = vmatprep.subr.mxu0 0.0
        %1264 = vmatpush1.msra.mxu0 0.0
        %1265 = vmatprep.subr.mxu0 0.0
        %1266 = vmatpush1.msra.mxu0 0.0
        %1267 = vmatprep.subr.mxu0 0.0
        %1268 = vmatpush1.msra.mxu0 0.0
        %1269 = vmatprep.subr.mxu0 0.0
        %1270 = vmatpush1.msra.mxu0 0.0
        %1271 = vmatprep.subr.mxu0 0.0
        %1272 = vmatpush1.msra.mxu0 0.0
        %1273 = vmatprep.subr.mxu0 0.0
        %1274 = vmatpush1.msra.mxu0 0.0
        %1275 = vmatprep.subr.mxu0 0.0
        %1276 = vmatpush1.msra.mxu0 0.0
        %1277 = vmatprep.subr.mxu0 0.0
        %1278 = vmatpush1.msra.mxu0 0.0
        %1279 = vmatprep.subr.mxu0 0.0
        %1280 = vmatpush1.msra.mxu0 0.0
        %1281 = vmatprep.subr.mxu0 0.0
        %1282 = vmatpush1.msra.mxu0 0.0
        %1283 = vmatprep.mubr.f32.mxu0 0.0
        %1284 = vmatmul.mubr.f32.gmra.mrb[0].mxu0 %v1217
        %v1285 = vpop.f32.mrb[0].mxu0
        %v1286 = vadd.f32 0.0, %v1285
        %v1287 = vpop.f32.mrb[0].mxu0
        %1288 = vdwg.mxu0
        %v1289 = vrcp.pop %v1212
        %v1290 = vmul.f32 %v1286, %v1289
        %1292 = vrot.lane.b32.xlu0 %v1290, 24
        %v1293 = vpop.permute.xlu0 %1292
        %v1295 = vadd.f32 %v530, %v1293
        %vm1296 = vcmask 261312
        %1297 = vst.msk [vmem:[#allocation2] sm:$0xff] %vm1296, %v1295
        %v1298 = vld [vmem:[#allocation2] sm:$0xff]
        %v1299 = vld [vmem:[#allocation11] sm:$0xff]
        %v1300 = vld [vmem:[#allocation11 + $0x8] sm:$0xff]
        %v1301 = vld [vmem:[#allocation11 + $0x10] sm:$0xff]
        %v1302 = vld [vmem:[#allocation11 + $0x18] sm:$0xff]
        %v1303 = vld [vmem:[%s8] sm:$0x1]
        %v1305 = vlaneseq
        %v1306 = vshrl.u32 %v1305, 7
        %v1307 = vsub.s32 0, %v1306
        %v1308 = vrot.slane %v1303, %v1307
        %vm1310 = vcmask 261120
        %v1312 = vsel %vm1310, %v1298, 0
        %1314 = vmatprep.subr.mxu0 0.0
        %1315 = vmatpush1.msra.mxu0 %v1299
        %1316 = vmatprep.subr.mxu0 0.0
        %1317 = vmatpush1.msra.mxu0 %v1300
        %1318 = vmatprep.subr.mxu0 0.0
        %1319 = vmatpush1.msra.mxu0 %v1301
        %1320 = vmatprep.subr.mxu0 0.0
        %1321 = vmatpush1.msra.mxu0 %v1302
        %1322 = vmatprep.subr.mxu0 0.0
        %1323 = vmatpush1.msra.mxu0 0.0
        %1324 = vmatprep.subr.mxu0 0.0
        %1325 = vmatpush1.msra.mxu0 0.0
        %1326 = vmatprep.subr.mxu0 0.0
        %1327 = vmatpush1.msra.mxu0 0.0
        %1328 = vmatprep.subr.mxu0 0.0
        %1329 = vmatpush1.msra.mxu0 0.0
        %1330 = vmatprep.subr.mxu0 0.0
        %1331 = vmatpush1.msra.mxu0 0.0
        %1332 = vmatprep.subr.mxu0 0.0
        %1333 = vmatpush1.msra.mxu0 0.0
        %1334 = vmatprep.subr.mxu0 0.0
        %1335 = vmatpush1.msra.mxu0 0.0
        %1336 = vmatprep.subr.mxu0 0.0
        %1337 = vmatpush1.msra.mxu0 0.0
        %1338 = vmatprep.subr.mxu0 0.0
        %1339 = vmatpush1.msra.mxu0 0.0
        %1340 = vmatprep.subr.mxu0 0.0
        %1341 = vmatpush1.msra.mxu0 0.0
        %1342 = vmatprep.subr.mxu0 0.0
        %1343 = vmatpush1.msra.mxu0 0.0
        %1344 = vmatprep.subr.mxu0 0.0
        %1345 = vmatpush1.msra.mxu0 0.0
        %1346 = vmatprep.subr.mxu0 0.0
        %1347 = vmatpush1.msra.mxu0 0.0
        %1348 = vmatprep.subr.mxu0 0.0
        %1349 = vmatpush1.msra.mxu0 0.0
        %1350 = vmatprep.subr.mxu0 0.0
        %1351 = vmatpush1.msra.mxu0 0.0
        %1352 = vmatprep.subr.mxu0 0.0
        %1353 = vmatpush1.msra.mxu0 0.0
        %1354 = vmatprep.subr.mxu0 0.0
        %1355 = vmatpush1.msra.mxu0 0.0
        %1356 = vmatprep.subr.mxu0 0.0
        %1357 = vmatpush1.msra.mxu0 0.0
        %1358 = vmatprep.subr.mxu0 0.0
        %1359 = vmatpush1.msra.mxu0 0.0
        %1360 = vmatprep.subr.mxu0 0.0
        %1361 = vmatpush1.msra.mxu0 0.0
        %1362 = vmatprep.subr.mxu0 0.0
        %1363 = vmatpush1.msra.mxu0 0.0
        %1364 = vmatprep.subr.mxu0 0.0
        %1365 = vmatpush1.msra.mxu0 0.0
        %1366 = vmatprep.subr.mxu0 0.0
        %1367 = vmatpush1.msra.mxu0 0.0
        %1368 = vmatprep.subr.mxu0 0.0
        %1369 = vmatpush1.msra.mxu0 0.0
        %1370 = vmatprep.subr.mxu0 0.0
        %1371 = vmatpush1.msra.mxu0 0.0
        %1372 = vmatprep.subr.mxu0 0.0
        %1373 = vmatpush1.msra.mxu0 0.0
        %1374 = vmatprep.subr.mxu0 0.0
        %1375 = vmatpush1.msra.mxu0 0.0
        %1376 = vmatprep.subr.mxu0 0.0
        %1377 = vmatpush1.msra.mxu0 0.0
        %1378 = vmatprep.mubr.f32.mxu0 0.0
        %1379 = vmatmul.mubr.f32.gmra.mrb[0].mxu0 %v1312
        %v1380 = vpop.f32.mrb[0].mxu0
        %v1381 = vadd.f32 %v1308, %v1380
        %v1382 = vpop.f32.mrb[0].mxu0
        %1383 = vdwg.mxu0
        %v1384 = vmax.f32 %v1381, 0.0
        %v1385 = vadd.f32 %v1298, %v1384
        %1386 = vst.msk [vmem:[%s447] sm:$0xff] %vm1310, %v1385
        %s1387 = sand.u32 %s242, 1
        %s1388 = scalar_lea.sflag [#allocation5], %s1387
        %s1389 = sand.u32 %s242, 1
        %s1390 = smul.addr %s1389, 8
        %s1391 = scalar_lea.vmem [#allocation12], %s1390
        // Predicated region
        $region77: #{tpu_custom_call.1} parent=55 // pred_check
          %p1392 = pneg %p252
        $region78: #{tpu_custom_call.1} parent=55 // pred_check_branch
          %1394 = sbr.rel (%p1392) target = $region80
        $region79: #{tpu_custom_call.1} parent=55 // pred_region
          %s1396 = ssub.s32 128, 128
          %1397 = vsyncadd %s1388, %s1396
          %s1398 = smul.addr %s30, 128
          %s1399 = scalar_lea.hbm %s9, %s1398
          %s1401 = sshll.u32 %s1391, 4
          %s1402 = int_to_ptr.vmem [resolvable:$true] %s1401
          %1404 = dma.vmem_to_hbm [thread:$0]  %s1402, 128, %s1399, %s1388
        $region80: #{tpu_custom_call.1} parent=55 // pred_fallthru
          _
      $region56: #{tpu_custom_call.1} parent=5 // pred_fallthru
        _
      %p1405 = scmp.le.s32.totalorder 2, %s25
      // Predicated region
      $region81: #{tpu_custom_call.1} parent=5 // pred_check
        %p1406 = pneg %p1405
      $region82: #{tpu_custom_call.1} parent=5 // pred_check_branch
        %1408 = sbr.rel (%p1406) target = $region84
      $region83: #{tpu_custom_call.1} parent=5 // pred_region
        %s1409 = ssub.s32 %s25, 2
        // Predicated region
        $region85: #{tpu_custom_call.1} parent=83 // pred_check
          %p1410 = pneg %p258
        $region86: #{tpu_custom_call.1} parent=83 // pred_check_branch
          %1412 = sbr.rel (%p1410) target = $region88
        $region87: #{tpu_custom_call.1} parent=83 // pred_region
          %s1413 = sand.u32 %s243, 1
          %s1414 = scalar_lea.sflag [#allocation5], %s1413
          %s1415 = sand.u32 %s243, 1
          %s1416 = smul.addr %s1415, 8
          %s1417 = scalar_lea.vmem [#allocation12], %s1416
          %1418 = dma.done %s1414, 128
        $region88: #{tpu_custom_call.1} parent=83 // pred_fallthru
          _
      $region84: #{tpu_custom_call.1} parent=5 // pred_fallthru
        _
    $region6: #{tpu_custom_call.1} parent=1 // loop_footer
      %s29 = sadd.s32 1, %s25
    $region7: #{tpu_custom_call.1} parent=1 // loop_footer_branch
      %24 = sbr.rel target = $region3
    $region8: #{tpu_custom_call.1} parent=1 // loop_exit
      _
    %1419 = vsyncpa [#allocation4], 1
    %s1420 = scalar_lea.sflag [#allocation4], 1
    %1421 = vsyncpa %s1420, 1
    %1422 = vsyncpa [#allocation7], 1
    %s1423 = scalar_lea.sflag [#allocation7], 1
    %1424 = vsyncpa %s1423, 1
    %1425 = vsyncpa [#allocation10], 1
    %1426 = vsyncpa [#allocation5], 1
    %s1427 = scalar_lea.sflag [#allocation5], 1
    %1428 = vsyncpa %s1427, 1

</llo_original>
